<compile_context>
chip_gen: v7x
topology: tpu7x:2x2x1
jax: 0.10.0
libtpu: 0.0.40
codegen_flags: <defaults>
</compile_context>

<pallas_src>
import functools

import jax
import jax.numpy as jnp
from jax.experimental import pallas as pl
from jax.experimental.pallas import tpu as pltpu

_LANE = 128  # TPU lane width; hidden/class dims padded to this


def _round_up(x, m):
    return (x + m - 1) // m * m


def _vmem_capacity_bytes():
    """Per-TensorCore VMEM capacity; falls back to the most restrictive gen (v7x)."""
    try:
        return int(pltpu.get_tpu_info().vmem_capacity_bytes)
    except Exception:
        return 64 << 20


def _fused_vmem_bytes(n_pad, tm, a_bufs):
    """Estimate of the kernel's VMEM footprint for the given tiling."""
    a = a_bufs * tm * n_pad * 2          # A_hat row strip(s), bf16
    xw1 = n_pad * _LANE * 2              # X@W1 resident, bf16, Buffered(1)
    w2 = _LANE * _LANE * 4               # W2 resident, f32, Buffered(1)
    biases = 2 * _LANE * 4               # b1 + b2, f32, Buffered(1)
    out = 2 * tm * _LANE * 4             # output strip, f32, double-buffered
    h = n_pad * _LANE * 2                # hidden-activation scratch, bf16
    return a + xw1 + w2 + biases + out + h


def _select_tiles(n_pad, budget_bytes):
    """Return (tm, a_buffer_count) for the A_hat row-strip pipeline."""
    # Whole A resident + single-buffered: A is DMA'd from HBM exactly once.
    if _fused_vmem_bytes(n_pad, n_pad, 1) <= budget_bytes:
        return n_pad, 1
    # Otherwise: largest strip (of the (8,128)-friendly divisors of n_pad) that
    # fits with the default double-buffering; bigger strips amortize the
    # ~0.35 us per-grid-step overhead and push the A DMA toward HBM roofline.
    for tm in (1024, 512, 256, 128):
        if n_pad % tm == 0 and _fused_vmem_bytes(n_pad, tm, 2) <= budget_bytes:
            return tm, 2
    # TODO(synk): graphs this large need the H-spill-to-HBM variant.
    return 128, 2


# ------------------------------ fused Pallas kernel ------------------------------ #

def _fused_gcn_kernel(a_ref, xw1_ref, b1_ref, w2_ref, b2_ref, o_ref, h_ref):
    """Two GCN layers fused in one pallas_call.

    grid = (phase, row_strip), executed sequentially ("arbitrary", "arbitrary"):
      phase 0: per strip  H[strip] = relu(A[strip] @ XW1 + b1)
               (H stays in a persistent VMEM scratch, never written to HBM)
      phase 1: per strip  O[strip] = log_softmax((A[strip] @ H) @ W2 + b2)
               (padded class lanes already masked to -1e30 via b2)
    """
    phase = pl.program_id(0)
    strip = pl.program_id(1)
    tm = a_ref.shape[0]

    # --- phase 0: hidden row strip, kept resident in the VMEM scratch ---
    @pl.when(phase == 0)
    def _():
        agg = jnp.dot(a_ref[...], xw1_ref[...], preferred_element_type=jnp.float32)
        h = jnp.maximum(agg + b1_ref[...], 0.0)            # bias AFTER aggregation
        row0 = pl.multiple_of(strip * tm, tm)
        h_ref[pl.ds(row0, tm), :] = h.astype(h_ref.dtype)

    # --- phase 1: aggregate + (f32) output projection + bias + log-softmax ---
    @pl.when(phase == 1)
    def _():
        agg = jnp.dot(a_ref[...], h_ref[...], preferred_element_type=jnp.float32)
        z = jnp.dot(agg, w2_ref[...], preferred_element_type=jnp.float32) + b2_ref[...]
        m = jnp.max(z, axis=1, keepdims=True)
        s = z - m
        lse = jnp.log(jnp.sum(jnp.exp(s), axis=1, keepdims=True))
        o_ref[...] = s - lse


# --------------------------------- wrappers ---------------------------------- #

def prepare_adjacency(a_hat):
    """Pad + bf16-cast A_hat ONCE per graph (hoisted out of the per-call hot path).

    The pad/cast reads N^2*4 B and writes N^2*2 B — more HBM traffic than the
    kernel's own A reads — so it must not run on every forward call.
    """
    n = a_hat.shape[0]
    n_pad = _round_up(n, _LANE)
    return jnp.zeros((n_pad, n_pad), jnp.bfloat16).at[:n, :n].set(
        a_hat.astype(jnp.bfloat16))


def gcn_net_forward(params, a_p, x, *, tm=None):
    """Fused 2-layer GCN forward.

    Args:
      params: dict with w1 [F,16], b1 [16], w2 [16,C], b2 [C] (f32).
      a_p:    prepared adjacency from prepare_adjacency(), (n_pad, n_pad) bf16.
      x:      node features, (N, F) f32.
      tm:     optional row-strip override (must divide n_pad); None = auto.
    Returns:
      (N, C) log-probabilities (f32).
    """
    n, f = x.shape
    n_pad = a_p.shape[0]
    hid = params["w1"].shape[1]
    num_classes = params["w2"].shape[1]
    assert a_p.shape == (n_pad, n_pad) and n_pad % _LANE == 0 and n <= n_pad
    assert params["w1"].shape[0] == f
    assert hid <= _LANE and num_classes <= _LANE

    cap = _vmem_capacity_bytes()
    budget = int(cap * 0.8)
    if tm is None:
        tm, a_bufs = _select_tiles(n_pad, budget)
    else:
        assert n_pad % tm == 0
        a_bufs = 1 if tm == n_pad else 2
    num_strips = n_pad // tm

    needed = _fused_vmem_bytes(n_pad, tm, a_bufs)
    vmem_limit = max(min(needed + (8 << 20), int(cap * 0.9)), 16 << 20)

    bf = jnp.bfloat16
    # X @ W1 hoisted out of the kernel: one tiny matmul, f32 accumulation,
    # lane-padded.  Saves the resident (n_pad, f_pad) X block inside the kernel.
    xw1 = jnp.dot(x.astype(bf), params["w1"].astype(bf),
                  preferred_element_type=jnp.float32)
    xw1_p = jnp.zeros((n_pad, _LANE), bf).at[:n, :hid].set(xw1.astype(bf))
    b1_p = jnp.zeros((1, _LANE), jnp.float32).at[0, :hid].set(params["b1"])
    w2_p = jnp.zeros((_LANE, _LANE), jnp.float32).at[:hid, :num_classes].set(params["w2"])
    # Padded W2 columns are zero, so padded logits equal b2 exactly: bake the
    # class-lane mask into b2 and drop the per-strip iota/where from the kernel.
    b2_p = jnp.full((1, _LANE), -1e30, jnp.float32).at[0, :num_classes].set(params["b2"])

    if a_bufs == 1:
        # Whole A resident, single-buffered: one HBM read of A for both phases.
        a_spec = pl.BlockSpec((tm, n_pad), lambda p, i: (i, 0),
                              pipeline_mode=pl.Buffered(1))
    else:
        # Row strips, default double-buffering (compute hides under the strip DMA).
        a_spec = pl.BlockSpec((tm, n_pad), lambda p, i: (i, 0))

    out_pad = pl.pallas_call(
        _fused_gcn_kernel,
        out_shape=jax.ShapeDtypeStruct((n_pad, _LANE), jnp.float32),
        grid_spec=pltpu.PrefetchScalarGridSpec(
            num_scalar_prefetch=0,
            grid=(2, num_strips),                                   # (phase, row strip)
            in_specs=[
                a_spec,                                             # A_hat (bf16)
                pl.BlockSpec((n_pad, _LANE), lambda p, i: (0, 0),
                             pipeline_mode=pl.Buffered(1)),         # X@W1 (resident)
                pl.BlockSpec((1, _LANE), lambda p, i: (0, 0),
                             pipeline_mode=pl.Buffered(1)),         # b1
                pl.BlockSpec((_LANE, _LANE), lambda p, i: (0, 0),
                             pipeline_mode=pl.Buffered(1)),         # W2 (f32)
                pl.BlockSpec((1, _LANE), lambda p, i: (0, 0),
                             pipeline_mode=pl.Buffered(1)),         # b2 (pre-masked)
            ],
            # Phase 0 never writes the output; keeping the block index constant
            # there (p*i == 0) means the only HBM writebacks are the final
            # (phase-1) row strips.
            out_specs=pl.BlockSpec((tm, _LANE), lambda p, i: (p * i, 0)),
            scratch_shapes=[
                pltpu.VMEM((n_pad, _LANE), bf),   # H (hidden activations, never to HBM)
            ],
        ),
        compiler_params=pltpu.CompilerParams(
            # Phase 1 depends on every phase-0 strip through the VMEM scratch,
            # so both axes must run sequentially on one TensorCore.
            dimension_semantics=("arbitrary", "arbitrary"),
            vmem_limit_bytes=int(vmem_limit),
        ),
    )(a_p, xw1_p, b1_p, w2_p, b2_p)

    return out_pad[:n, :num_classes]


def gcn_net_reference(params, a_hat, x):
    """Pure-JAX reference (f32) with the same semantics."""
    h = jnp.maximum(a_hat @ (x @ params["w1"]) + params["b1"], 0.0)
    z = a_hat @ (h @ params["w2"]) + params["b2"]
    return jax.nn.log_softmax(z, axis=1)


# ------------------------------- GCNNet glue -------------------------------- #

def normalize_adjacency(edge_index, num_nodes):
    """Dense A_hat = D^-1/2 (A + I) D^-1/2 from a COO edge index [2, E]."""
    a = jnp.zeros((num_nodes, num_nodes), jnp.float32)
    a = a.at[edge_index[0], edge_index[1]].set(1.0)
    a = a.at[edge_index[1], edge_index[0]].set(1.0)        # symmetrize
    eye = jnp.eye(num_nodes, dtype=jnp.float32)
    a = a * (1.0 - eye) + eye                              # exactly one self-loop per node
    deg = jnp.sum(a, axis=1)
    d_inv_sqrt = 1.0 / jnp.sqrt(deg)
    return a * d_inv_sqrt[:, None] * d_inv_sqrt[None, :]


def init_gcn_params(key, in_dim, hidden_dim, num_classes):
    k1, k2 = jax.random.split(key)

    def glorot(k, fan_in, fan_out):
        limit = jnp.sqrt(6.0 / (fan_in + fan_out))
        return jax.random.uniform(k, (fan_in, fan_out), jnp.float32, -limit, limit)

    return {
        "w1": glorot(k1, in_dim, hidden_dim),
        "b1": jnp.zeros((hidden_dim,), jnp.float32),
        "w2": glorot(k2, hidden_dim, num_classes),
        "b2": jnp.zeros((num_classes,), jnp.float32),
    }


# ----------------------------------- main ----------------------------------- #

if __name__ == "__main__":
    num_nodes = 192     # padded to 256
    in_dim = 8
    hidden_dim = 16     # fixed by GCNNet
    num_classes = 4

    key = jax.random.PRNGKey(0)
    k_feat, k_edge, k_param = jax.random.split(key, 3)

    # Deterministic synthetic graph: a ring + random chords.
    ring_src = jnp.arange(num_nodes, dtype=jnp.int32)
    ring_dst = (ring_src + 1) % num_nodes
    rand_src = jax.random.randint(k_edge, (64,), 0, num_nodes, jnp.int32)
    rand_dst = jax.random.randint(jax.random.fold_in(k_edge, 1), (64,), 0,
                                  num_nodes, jnp.int32)
    edge_index = jnp.stack([jnp.concatenate([ring_src, rand_src]),
                            jnp.concatenate([ring_dst, rand_dst])], axis=0)

    x = jax.random.normal(k_feat, (num_nodes, in_dim), jnp.float32)
    a_hat = normalize_adjacency(edge_index, num_nodes)
    params = init_gcn_params(k_param, in_dim, hidden_dim, num_classes)

    # Pad/cast A once per graph (hoisted out of the forward hot path).
    a_p = prepare_adjacency(a_hat)
    ref = gcn_net_reference(params, a_hat, x)

    # Auto tiling: whole A resident, single-buffered, DMA'd once.
    fwd_auto = jax.jit(gcn_net_forward)
    out = fwd_auto(params, a_p, x)
    jax.block_until_ready(out)

    assert out.shape == (num_nodes, num_classes)
    # Rows of log-softmax must exponentiate-sum to 1.
    assert jnp.allclose(jnp.sum(jnp.exp(out), axis=1), 1.0, atol=1e-5)
    # Match the f32 pure-JAX reference within bf16 input-rounding tolerance.
    assert jnp.allclose(out, ref, atol=5e-2, rtol=5e-2), float(jnp.max(jnp.abs(out - ref)))

    # Forced multi-strip tiling: exercises the double-buffered A-strip path.
    fwd_strips = jax.jit(functools.partial(gcn_net_forward, tm=128))
    out2 = fwd_strips(params, a_p, x)
    jax.block_until_ready(out2)
    assert jnp.allclose(out2, ref, atol=5e-2, rtol=5e-2), float(jnp.max(jnp.abs(out2 - ref)))

    print("KERNEL_OK")
</pallas_src>

<mosaic_0001>
module attributes {stable_mosaic.version = 11 : i64} {
  func.func @_fused_gcn_kernel(%arg0: i32, %arg1: i32, %arg2: memref<256x256xbf16, #tpu.memory_space<vmem>>, %arg3: memref<256x128xbf16, #tpu.memory_space<vmem>>, %arg4: memref<1x128xf32, #tpu.memory_space<vmem>>, %arg5: memref<128x128xf32, #tpu.memory_space<vmem>>, %arg6: memref<1x128xf32, #tpu.memory_space<vmem>>, %arg7: memref<256x128xf32, #tpu.memory_space<vmem>>, %arg8: memref<256x128xbf16, #tpu.memory_space<vmem>>) attributes {dimension_semantics = [#tpu.dimension_semantics<arbitrary>, #tpu.dimension_semantics<arbitrary>], iteration_bounds = array<i64: 2, 1>, scalar_prefetch = 0 : i64, scratch_operands = 1 : i64, tpu.core_type = #tpu.core_type<tc>, window_params = [{pipeline_mode = #tpu.pipeline_mode<synchronous>, transform_indices = @transform_0, window_bounds = array<i64: 256, 256>}, {pipeline_mode = #tpu.pipeline_mode<synchronous>, transform_indices = @transform_1, window_bounds = array<i64: 256, 128>}, {pipeline_mode = #tpu.pipeline_mode<synchronous>, transform_indices = @transform_2, window_bounds = array<i64: 1, 128>}, {pipeline_mode = #tpu.pipeline_mode<synchronous>, transform_indices = @transform_3, window_bounds = array<i64: 128, 128>}, {pipeline_mode = #tpu.pipeline_mode<synchronous>, transform_indices = @transform_4, window_bounds = array<i64: 1, 128>}, {transform_indices = @transform_5, window_bounds = array<i64: 256, 128>}]} {
    %c0_i32 = arith.constant 0 : i32
    %0 = arith.cmpi eq, %arg0, %c0_i32 : i32
    %1 = arith.extui %0 : i1 to i32
    %c0_i32_0 = arith.constant 0 : i32
    %2 = arith.cmpi ne, %1, %c0_i32_0 : i32
    scf.if %2 {
      %c0 = arith.constant 0 : index
      %c0_2 = arith.constant 0 : index
      %6 = vector.load %arg2[%c0, %c0_2] : memref<256x256xbf16, #tpu.memory_space<vmem>>, vector<256x256xbf16>
      %c0_3 = arith.constant 0 : index
      %c0_4 = arith.constant 0 : index
      %7 = vector.load %arg3[%c0_3, %c0_4] : memref<256x128xbf16, #tpu.memory_space<vmem>>, vector<256x128xbf16>
      %cst = arith.constant dense<0.000000e+00> : vector<256x128xf32>
      %8 = tpu.matmul %6, %7, %cst {dimension_numbers = #tpu.dot_dimension_numbers<[1], [0], [0], [1], [0, 0, 1, 1], [], []>} : vector<256x256xbf16>, vector<256x128xbf16>, vector<256x128xf32> -> vector<256x128xf32>
      %c0_5 = arith.constant 0 : index
      %c0_6 = arith.constant 0 : index
      %9 = vector.load %arg4[%c0_5, %c0_6] : memref<1x128xf32, #tpu.memory_space<vmem>>, vector<1x128xf32>
      %10 = vector.broadcast %9 : vector<1x128xf32> to vector<256x128xf32>
      %11 = arith.addf %8, %10 : vector<256x128xf32>
      %cst_7 = arith.constant 0.000000e+00 : f32
      %12 = vector.broadcast %cst_7 : f32 to vector<256x128xf32>
      %13 = arith.maximumf %11, %12 : vector<256x128xf32>
      %c256_i32 = arith.constant 256 : i32
      %14 = arith.muli %arg1, %c256_i32 : i32
      %15 = tpu.assume_multiple %14, 256 : i32
      %16 = arith.truncf %13 : vector<256x128xf32> to vector<256x128xbf16>
      %17 = arith.index_cast %15 : i32 to index
      %c0_8 = arith.constant 0 : index
      %18 = vector.load %arg8[%17, %c0_8] : memref<256x128xbf16, #tpu.memory_space<vmem>>, vector<256x128xbf16>
      tpu.vector_store %arg8[%17, %c0_8], %16 {strides = array<i32>} : memref<256x128xbf16, #tpu.memory_space<vmem>>, vector<256x128xbf16>,
    } else {
    }
    %c1_i32 = arith.constant 1 : i32
    %3 = arith.cmpi eq, %arg0, %c1_i32 : i32
    %4 = arith.extui %3 : i1 to i32
    %c0_i32_1 = arith.constant 0 : i32
    %5 = arith.cmpi ne, %4, %c0_i32_1 : i32
    scf.if %5 {
      %c0 = arith.constant 0 : index
      %c0_2 = arith.constant 0 : index
      %6 = vector.load %arg2[%c0, %c0_2] : memref<256x256xbf16, #tpu.memory_space<vmem>>, vector<256x256xbf16>
      %c0_3 = arith.constant 0 : index
      %c0_4 = arith.constant 0 : index
      %7 = vector.load %arg8[%c0_3, %c0_4] : memref<256x128xbf16, #tpu.memory_space<vmem>>, vector<256x128xbf16>
      %cst = arith.constant dense<0.000000e+00> : vector<256x128xf32>
      %8 = tpu.matmul %6, %7, %cst {dimension_numbers = #tpu.dot_dimension_numbers<[1], [0], [0], [1], [0, 0, 1, 1], [], []>} : vector<256x256xbf16>, vector<256x128xbf16>, vector<256x128xf32> -> vector<256x128xf32>
      %c0_5 = arith.constant 0 : index
      %c0_6 = arith.constant 0 : index
      %9 = vector.load %arg5[%c0_5, %c0_6] : memref<128x128xf32, #tpu.memory_space<vmem>>, vector<128x128xf32>
      %cst_7 = arith.constant dense<0.000000e+00> : vector<256x128xf32>
      %10 = tpu.matmul %8, %9, %cst_7 {dimension_numbers = #tpu.dot_dimension_numbers<[1], [0], [0], [1], [0, 0, 1, 1], [], []>} : vector<256x128xf32>, vector<128x128xf32>, vector<256x128xf32> -> vector<256x128xf32>
      %c0_8 = arith.constant 0 : index
      %c0_9 = arith.constant 0 : index
      %11 = vector.load %arg6[%c0_8, %c0_9] : memref<1x128xf32, #tpu.memory_space<vmem>>, vector<1x128xf32>
      %12 = vector.broadcast %11 : vector<1x128xf32> to vector<256x128xf32>
      %13 = arith.addf %10, %12 : vector<256x128xf32>
      %cst_10 = arith.constant dense<0xFF800000> : vector<256xf32>
      %14 = vector.multi_reduction <maximumf>, %13, %cst_10 [1] : vector<256x128xf32> to vector<256xf32>
      %15 = vector.shape_cast %14 : vector<256xf32> to vector<256x1xf32>
      %16 = vector.broadcast %15 : vector<256x1xf32> to vector<256x128xf32>
      %17 = arith.subf %13, %16 : vector<256x128xf32>
      %18 = math.exp %17 : vector<256x128xf32>
      %cst_11 = arith.constant dense<0.000000e+00> : vector<256xf32>
      %19 = vector.multi_reduction <add>, %18, %cst_11 [1] : vector<256x128xf32> to vector<256xf32>
      %20 = vector.shape_cast %19 : vector<256xf32> to vector<256x1xf32>
      %21 = math.log %20 : vector<256x1xf32>
      %22 = vector.broadcast %21 : vector<256x1xf32> to vector<256x128xf32>
      %23 = arith.subf %17, %22 : vector<256x128xf32>
      %c0_12 = arith.constant 0 : index
      %c0_13 = arith.constant 0 : index
      %24 = vector.load %arg7[%c0_12, %c0_13] : memref<256x128xf32, #tpu.memory_space<vmem>>, vector<256x128xf32>
      tpu.vector_store %arg7[%c0_12, %c0_13], %23 {strides = array<i32>} : memref<256x128xf32, #tpu.memory_space<vmem>>, vector<256x128xf32>,
    } else {
    }
    return
  }
  func.func @transform_0(%arg0: i32, %arg1: i32) -> (i32, i32) {
    %c0_i32 = arith.constant 0 : i32
    %c0_i32_0 = arith.constant 0 : i32
    return %arg1, %c0_i32 : i32, i32
  }
  func.func @transform_1(%arg0: i32, %arg1: i32) -> (i32, i32) {
    %c0_i32 = arith.constant 0 : i32
    %c0_i32_0 = arith.constant 0 : i32
    %c0_i32_1 = arith.constant 0 : i32
    return %c0_i32, %c0_i32_0 : i32, i32
  }
  func.func @transform_2(%arg0: i32, %arg1: i32) -> (i32, i32) {
    %c0_i32 = arith.constant 0 : i32
    %c0_i32_0 = arith.constant 0 : i32
    %c0_i32_1 = arith.constant 0 : i32
    return %c0_i32, %c0_i32_0 : i32, i32
  }
  func.func @transform_3(%arg0: i32, %arg1: i32) -> (i32, i32) {
    %c0_i32 = arith.constant 0 : i32
    %c0_i32_0 = arith.constant 0 : i32
    %c0_i32_1 = arith.constant 0 : i32
    return %c0_i32, %c0_i32_0 : i32, i32
  }
  func.func @transform_4(%arg0: i32, %arg1: i32) -> (i32, i32) {
    %c0_i32 = arith.constant 0 : i32
    %c0_i32_0 = arith.constant 0 : i32
    %c0_i32_1 = arith.constant 0 : i32
    return %c0_i32, %c0_i32_0 : i32, i32
  }
  func.func @transform_5(%arg0: i32, %arg1: i32) -> (i32, i32) {
    %0 = arith.muli %arg0, %arg1 : i32
    %c0_i32 = arith.constant 0 : i32
    %c0_i32_0 = arith.constant 0 : i32
    return %0, %c0_i32 : i32, i32
  }
}

</mosaic_0001>

<llo_original>
// kernel: gcn_net_forward.1
$region0: #{gcn_net_forward.1}
  #allocation0 [shape = 'u32[]', space=smem, size = 0x4, offset = 0x4, fixed_abs, tag = 'smem constant byte address 0x4 - core index']
  #allocation1 [shape = 'u32[144,128]{1,0:T(1,128)}', space=vmem, size = 0x12000, scoped, tag = 'internal scratch']
  #allocation2 [shape = 'bf16[256,128]{1,0:T(16,128)(2,1)}', space=vmem, size = 0x10000, scoped, tag = 'scratch operand']
  %s0 = inlined_call_operand.vmem [shape: bf16[256,256], index: 0, kind: input, shape index: {}]
  %s1 = inlined_call_operand.vmem [shape: bf16[256,128], index: 1, kind: input, shape index: {}]
  %s2 = inlined_call_operand.vmem [shape: f32[1,128], index: 2, kind: input, shape index: {}]
  %s3 = inlined_call_operand.vmem [shape: f32[128,128], index: 3, kind: input, shape index: {}]
  %s4 = inlined_call_operand.vmem [shape: f32[1,128], index: 4, kind: input, shape index: {}]
  %s5 = inlined_call_operand.vmem [shape: f32[256,128], index: 5, kind: output, shape index: {}]
  %s6 = sld [smem:[#allocation0]]
  $region61: #{gcn_net_forward.1} parent=0
    _
  %s8 = ssub.s32 1, %s6
  %s9 = scalar_select 0, %s8, %s6
  loop: start=0, step=1, limit=4
  $region2: #{gcn_net_forward.1} parent=0 // loop_pre_header
    _
  $region3: #{gcn_net_forward.1} parent=0 // loop_header
    %s11 = sphi 0, %s15
    %p12 = scmp.ge.s32.totalorder %s11, 4
    %s18 = sphi 0, %s30
    %s19 = sphi 0, %s26
    %s20 = sphi 0, %s18
    %s21 = sphi 0, %s19
    %s22 = sphi 0, %s20
    %s23 = sphi 0, %s21
    %s33 = sphi 0, %s35
    %s36 = sphi 0, %s33
    %s37 = sphi 0, %s36
    %s53 = sphi 0, %s37
    %s57 = sphi 0, %s57
    %s59 = sphi 0, %s57
    %s60 = sphi 0, %s59
    %s74 = sphi 0, %s60
    %s78 = sphi 0, %s78
    %s80 = sphi 0, %s78
    %s81 = sphi 0, %s80
    %s95 = sphi 0, %s81
    %s99 = sphi 0, %s99
    %s101 = sphi 0, %s99
    %s102 = sphi 0, %s101
    %s116 = sphi 0, %s102
    %s120 = sphi 0, %s120
    %s122 = sphi 0, %s120
    %s123 = sphi 0, %s122
    %s137 = sphi 0, %s123
    %s145 = sphi 0, %s147
    %s148 = sphi 0, %s145
    %s149 = sphi 0, %s148
    %s165 = sphi 0, %s149
  $region4: #{gcn_net_forward.1} parent=0 // loop_header_branch
    %14 = sbr.rel (%p12) target = $region8
  $region5: #{gcn_net_forward.1} parent=0 // loop_body
    %s16 = ssub.s32 %s11, 1
    %s17 = ssub.s32 %s11, 2
    %s24 = sadd.s32 1, %s19
    %p25 = scmp.ge.s32.totalorder %s24, 1
    %s26 = scalar_select %p25, 0, %s24
    %s27 = sadd.s32 1, %s18
    %s28 = scalar_select %p25, %s27, %s18
    %p29 = scmp.ge.s32.totalorder %s28, 2
    %s30 = scalar_select %p29, 0, %s28
    %s31 = ssub.s32 %s19, %s26
    %p32 = scmp.eq.s32.totalorder %s31, 0
    %s34 = sadd.s32 %s33, 1
    %s35 = scalar_select %p32, %s33, %s34
    %p38 = pneg %p32
    %p39 = scmp.eq.s32.totalorder %s11, 1
    %p40 = por %p38, %p39
    %p41 = scmp.ne.s32.totalorder %s33, %s36
    %p42 = scmp.eq.s32.totalorder %s11, 0
    %p43 = por %p41, %p42
    %p44 = scmp.ne.s32.totalorder %s33, %s36
    %p45 = scmp.eq.s32.totalorder %s16, 1
    %p46 = por %p44, %p45
    %p47 = scmp.ne.s32.totalorder %s36, %s37
    %p48 = scmp.eq.s32.totalorder %s16, 0
    %p49 = por %p47, %p48
    %p50 = scmp.ne.s32.totalorder %s36, %s37
    %p51 = scmp.eq.s32.totalorder %s17, 1
    %p52 = por %p50, %p51
    %p54 = scmp.ne.s32.totalorder %s37, %s53
    %p55 = scmp.eq.s32.totalorder %s17, 0
    %p56 = por %p54, %p55
    %s58 = sadd.s32 %s57, 1
    %p61 = scmp.eq.s32.totalorder %s11, 1
    %p62 = scmp.ne.s32.totalorder %s57, %s59
    %p63 = scmp.eq.s32.totalorder %s11, 0
    %p64 = por %p62, %p63
    %p65 = scmp.ne.s32.totalorder %s57, %s59
    %p66 = scmp.eq.s32.totalorder %s16, 1
    %p67 = por %p65, %p66
    %p68 = scmp.ne.s32.totalorder %s59, %s60
    %p69 = scmp.eq.s32.totalorder %s16, 0
    %p70 = por %p68, %p69
    %p71 = scmp.ne.s32.totalorder %s59, %s60
    %p72 = scmp.eq.s32.totalorder %s17, 1
    %p73 = por %p71, %p72
    %p75 = scmp.ne.s32.totalorder %s60, %s74
    %p76 = scmp.eq.s32.totalorder %s17, 0
    %p77 = por %p75, %p76
    %s79 = sadd.s32 %s78, 1
    %p82 = scmp.eq.s32.totalorder %s11, 1
    %p83 = scmp.ne.s32.totalorder %s78, %s80
    %p84 = scmp.eq.s32.totalorder %s11, 0
    %p85 = por %p83, %p84
    %p86 = scmp.ne.s32.totalorder %s78, %s80
    %p87 = scmp.eq.s32.totalorder %s16, 1
    %p88 = por %p86, %p87
    %p89 = scmp.ne.s32.totalorder %s80, %s81
    %p90 = scmp.eq.s32.totalorder %s16, 0
    %p91 = por %p89, %p90
    %p92 = scmp.ne.s32.totalorder %s80, %s81
    %p93 = scmp.eq.s32.totalorder %s17, 1
    %p94 = por %p92, %p93
    %p96 = scmp.ne.s32.totalorder %s81, %s95
    %p97 = scmp.eq.s32.totalorder %s17, 0
    %p98 = por %p96, %p97
    %s100 = sadd.s32 %s99, 1
    %p103 = scmp.eq.s32.totalorder %s11, 1
    %p104 = scmp.ne.s32.totalorder %s99, %s101
    %p105 = scmp.eq.s32.totalorder %s11, 0
    %p106 = por %p104, %p105
    %p107 = scmp.ne.s32.totalorder %s99, %s101
    %p108 = scmp.eq.s32.totalorder %s16, 1
    %p109 = por %p107, %p108
    %p110 = scmp.ne.s32.totalorder %s101, %s102
    %p111 = scmp.eq.s32.totalorder %s16, 0
    %p112 = por %p110, %p111
    %p113 = scmp.ne.s32.totalorder %s101, %s102
    %p114 = scmp.eq.s32.totalorder %s17, 1
    %p115 = por %p113, %p114
    %p117 = scmp.ne.s32.totalorder %s102, %s116
    %p118 = scmp.eq.s32.totalorder %s17, 0
    %p119 = por %p117, %p118
    %s121 = sadd.s32 %s120, 1
    %p124 = scmp.eq.s32.totalorder %s11, 1
    %p125 = scmp.ne.s32.totalorder %s120, %s122
    %p126 = scmp.eq.s32.totalorder %s11, 0
    %p127 = por %p125, %p126
    %p128 = scmp.ne.s32.totalorder %s120, %s122
    %p129 = scmp.eq.s32.totalorder %s16, 1
    %p130 = por %p128, %p129
    %p131 = scmp.ne.s32.totalorder %s122, %s123
    %p132 = scmp.eq.s32.totalorder %s16, 0
    %p133 = por %p131, %p132
    %p134 = scmp.ne.s32.totalorder %s122, %s123
    %p135 = scmp.eq.s32.totalorder %s17, 1
    %p136 = por %p134, %p135
    %p138 = scmp.ne.s32.totalorder %s123, %s137
    %p139 = scmp.eq.s32.totalorder %s17, 0
    %p140 = por %p138, %p139
    %s141 = smul.u32 %s18, %s19
    %s142 = smul.u32 %s30, %s26
    %s143 = ssub.s32 %s141, %s142
    %p144 = scmp.eq.s32.totalorder %s143, 0
    %s146 = sadd.s32 %s145, 1
    %s147 = scalar_select %p144, %s145, %s146
    %p150 = pneg %p144
    %p151 = scmp.eq.s32.totalorder %s11, 1
    %p152 = por %p150, %p151
    %p153 = scmp.ne.s32.totalorder %s145, %s148
    %p154 = scmp.eq.s32.totalorder %s11, 0
    %p155 = por %p153, %p154
    %p156 = scmp.ne.s32.totalorder %s145, %s148
    %p157 = scmp.eq.s32.totalorder %s16, 1
    %p158 = por %p156, %p157
    %p159 = scmp.ne.s32.totalorder %s148, %s149
    %p160 = scmp.eq.s32.totalorder %s16, 0
    %p161 = por %p159, %p160
    %p162 = scmp.ne.s32.totalorder %s148, %s149
    %p163 = scmp.eq.s32.totalorder %s17, 1
    %p164 = por %p162, %p163
    %p166 = scmp.ne.s32.totalorder %s149, %s165
    %p167 = scmp.eq.s32.totalorder %s17, 0
    %p168 = por %p166, %p167
    %p169 = scmp.le.s32.totalorder 1, %s11
    %p170 = scmp.lt.s32.totalorder %s11, 3
    %p171 = pnand %p169, %p170
    %p172 = pneg %p171
    // Predicated region
    $region9: #{gcn_net_forward.1} parent=5 // pred_check
      _
    $region10: #{gcn_net_forward.1} parent=5 // pred_check_branch
      %174 = sbr.rel (%p171) target = $region12
    $region11: #{gcn_net_forward.1} parent=5 // pred_region
      %s175 = ssub.s32 %s11, 1
      // Predicated region
      $region13: #{gcn_net_forward.1} parent=11 // pred_check
        %p176 = pneg %p49
      $region14: #{gcn_net_forward.1} parent=11 // pred_check_branch
        %178 = sbr.rel (%p176) target = $region16
      $region15: #{gcn_net_forward.1} parent=11 // pred_region
        %s179 = smul.u32 32, %s21
        %p180 = scmp.lt.s32.totalorder %s179, 31
        %s181 = scalar_select %p180, %s179, 31
        %s182 = smul.addr %s181, 2
        %s183 = smul.addr %s182, 4
        %s184 = scalar_lea.vmem %s0, %s183
        %s185 = smul.u32 32, %s21
      $region16: #{gcn_net_forward.1} parent=11 // pred_fallthru
        _
      // Predicated region
      $region17: #{gcn_net_forward.1} parent=11 // pred_check
        %p186 = pneg %p70
      $region18: #{gcn_net_forward.1} parent=11 // pred_check_branch
        %188 = sbr.rel (%p186) target = $region20
      $region19: #{gcn_net_forward.1} parent=11 // pred_region
        _
      $region20: #{gcn_net_forward.1} parent=11 // pred_fallthru
        _
      // Predicated region
      $region21: #{gcn_net_forward.1} parent=11 // pred_check
        %p189 = pneg %p91
      $region22: #{gcn_net_forward.1} parent=11 // pred_check_branch
        %191 = sbr.rel (%p189) target = $region24
      $region23: #{gcn_net_forward.1} parent=11 // pred_region
        _
      $region24: #{gcn_net_forward.1} parent=11 // pred_fallthru
        _
      // Predicated region
      $region25: #{gcn_net_forward.1} parent=11 // pred_check
        %p192 = pneg %p112
      $region26: #{gcn_net_forward.1} parent=11 // pred_check_branch
        %194 = sbr.rel (%p192) target = $region28
      $region27: #{gcn_net_forward.1} parent=11 // pred_region
        _
      $region28: #{gcn_net_forward.1} parent=11 // pred_fallthru
        _
      // Predicated region
      $region29: #{gcn_net_forward.1} parent=11 // pred_check
        %p195 = pneg %p133
      $region30: #{gcn_net_forward.1} parent=11 // pred_check_branch
        %197 = sbr.rel (%p195) target = $region32
      $region31: #{gcn_net_forward.1} parent=11 // pred_region
        _
      $region32: #{gcn_net_forward.1} parent=11 // pred_fallthru
        _
    $region12: #{gcn_net_forward.1} parent=5 // pred_fallthru
      _
    %p198 = scmp.lt.s32.totalorder %s11, 2
    // Predicated region
    $region33: #{gcn_net_forward.1} parent=5 // pred_check
      %p199 = pneg %p198
    $region34: #{gcn_net_forward.1} parent=5 // pred_check_branch
      %201 = sbr.rel (%p199) target = $region36
    $region35: #{gcn_net_forward.1} parent=5 // pred_region
      _
    $region36: #{gcn_net_forward.1} parent=5 // pred_fallthru
      _
    %p202 = scmp.le.s32.totalorder 1, %s11
    %p203 = scmp.lt.s32.totalorder %s11, 3
    %p204 = pnand %p202, %p203
    %p205 = pneg %p204
    // Predicated region
    $region37: #{gcn_net_forward.1} parent=5 // pred_check
      _
    $region38: #{gcn_net_forward.1} parent=5 // pred_check_branch
      %207 = sbr.rel (%p204) target = $region40
    $region39: #{gcn_net_forward.1} parent=5 // pred_region
      %s208 = ssub.s32 %s11, 1
      %s209 = smul.u32 32, %s21
      %p210 = scmp.lt.s32.totalorder %s209, 31
      %s211 = scalar_select %p210, %s209, 31
      %s212 = smul.addr %s211, 2
      %s213 = smul.addr %s212, 4
      %s214 = scalar_lea.vmem %s0, %s213
      %p215 = pneg %p49
      %p216 = pneg %p46
      %p217 = pneg %p70
      %p218 = pneg %p67
      %p219 = pneg %p91
      %p220 = pneg %p88
      %p221 = pneg %p112
      %p222 = pneg %p109
      %p223 = pneg %p133
      %p224 = pneg %p130
      %p225 = pneg %p161
      %p226 = pneg %p158
      %s227 = smul.u32 %s20, %s21
      %s228 = smul.u32 32, %s227
      %p229 = scmp.lt.s32.totalorder %s228, 31
      %s230 = scalar_select %p229, %s228, 31
      %s231 = smul.addr %s230, 8
      %s232 = scalar_lea.vmem %s5, %s231
      %s233 = smul.u32 32, %s21
      %p234 = scmp.lt.s32.totalorder %s233, 31
      %s235 = scalar_select %p234, %s233, 31
      %s236 = smul.addr %s235, 2
      %s237 = smul.addr %s236, 4
      %s238 = scalar_lea.vmem %s0, %s237
      %s239 = smul.u32 32, %s21
      %s240 = smul.u32 %s20, %s21
      %s241 = smul.u32 32, %s240
      %p242 = scmp.lt.s32.totalorder %s241, 31
      %s243 = scalar_select %p242, %s241, 31
      %s244 = smul.addr %s243, 8
      %s245 = scalar_lea.vmem %s5, %s244
      %s246 = smul.u32 %s20, %s21
      %s247 = smul.u32 32, %s246
      %p249 = scmp.eq.s32.totalorder %s20, 0
      // Predicated region
      $region41: #{gcn_net_forward.1} parent=39 // pred_check
        %p250 = pneg %p249
      $region42: #{gcn_net_forward.1} parent=39 // pred_check_branch
        %252 = sbr.rel (%p250) target = $region44
      $region43: #{gcn_net_forward.1} parent=39 // pred_region
        %v253 = vld [vmem:[%s238] sm:$0xff]
        %v254 = vld [vmem:[%s238 + $0x8] sm:$0xff]
        %v255 = vld [vmem:[%s238 + $0x10] sm:$0xff]
        %v256 = vld [vmem:[%s238 + $0x18] sm:$0xff]
        %v257 = vld [vmem:[%s238 + $0x20] sm:$0xff]
        %v258 = vld [vmem:[%s238 + $0x28] sm:$0xff]
        %v259 = vld [vmem:[%s238 + $0x30] sm:$0xff]
        %v260 = vld [vmem:[%s238 + $0x38] sm:$0xff]
        %v261 = vld [vmem:[%s238 + $0x40] sm:$0xff]
        %v262 = vld [vmem:[%s238 + $0x48] sm:$0xff]
        %v263 = vld [vmem:[%s238 + $0x50] sm:$0xff]
        %v264 = vld [vmem:[%s238 + $0x58] sm:$0xff]
        %v265 = vld [vmem:[%s238 + $0x60] sm:$0xff]
        %v266 = vld [vmem:[%s238 + $0x68] sm:$0xff]
        %v267 = vld [vmem:[%s238 + $0x70] sm:$0xff]
        %v268 = vld [vmem:[%s238 + $0x78] sm:$0xff]
        %v269 = vld [vmem:[%s238 + $0x80] sm:$0xff]
        %v270 = vld [vmem:[%s238 + $0x88] sm:$0xff]
        %v271 = vld [vmem:[%s238 + $0x90] sm:$0xff]
        %v272 = vld [vmem:[%s238 + $0x98] sm:$0xff]
        %v273 = vld [vmem:[%s238 + $0xa0] sm:$0xff]
        %v274 = vld [vmem:[%s238 + $0xa8] sm:$0xff]
        %v275 = vld [vmem:[%s238 + $0xb0] sm:$0xff]
        %v276 = vld [vmem:[%s238 + $0xb8] sm:$0xff]
        %v277 = vld [vmem:[%s238 + $0xc0] sm:$0xff]
        %v278 = vld [vmem:[%s238 + $0xc8] sm:$0xff]
        %v279 = vld [vmem:[%s238 + $0xd0] sm:$0xff]
        %v280 = vld [vmem:[%s238 + $0xd8] sm:$0xff]
        %v281 = vld [vmem:[%s238 + $0xe0] sm:$0xff]
        %v282 = vld [vmem:[%s238 + $0xe8] sm:$0xff]
        %v283 = vld [vmem:[%s238 + $0xf0] sm:$0xff]
        %v284 = vld [vmem:[%s238 + $0xf8] sm:$0xff]
        %v285 = vld [vmem:[%s1] sm:$0xf]
        %v286 = vld [vmem:[%s1 + $0x4] sm:$0xf]
        %v287 = vld [vmem:[%s1 + $0x8] sm:$0xf]
        %v288 = vld [vmem:[%s1 + $0xc] sm:$0xf]
        %v289 = vld [vmem:[%s1 + $0x10] sm:$0xf]
        %v290 = vld [vmem:[%s1 + $0x14] sm:$0xf]
        %v291 = vld [vmem:[%s1 + $0x18] sm:$0xf]
        %v292 = vld [vmem:[%s1 + $0x1c] sm:$0xf]
        %v293 = vld [vmem:[%s1 + $0x20] sm:$0xf]
        %v294 = vld [vmem:[%s1 + $0x24] sm:$0xf]
        %v295 = vld [vmem:[%s1 + $0x28] sm:$0xf]
        %v296 = vld [vmem:[%s1 + $0x2c] sm:$0xf]
        %v297 = vld [vmem:[%s1 + $0x30] sm:$0xf]
        %v298 = vld [vmem:[%s1 + $0x34] sm:$0xf]
        %v299 = vld [vmem:[%s1 + $0x38] sm:$0xf]
        %v300 = vld [vmem:[%s1 + $0x3c] sm:$0xf]
        %v301 = vld [vmem:[%s1 + $0x40] sm:$0xf]
        %v302 = vld [vmem:[%s1 + $0x44] sm:$0xf]
        %v303 = vld [vmem:[%s1 + $0x48] sm:$0xf]
        %v304 = vld [vmem:[%s1 + $0x4c] sm:$0xf]
        %v305 = vld [vmem:[%s1 + $0x50] sm:$0xf]
        %v306 = vld [vmem:[%s1 + $0x54] sm:$0xf]
        %v307 = vld [vmem:[%s1 + $0x58] sm:$0xf]
        %v308 = vld [vmem:[%s1 + $0x5c] sm:$0xf]
        %v309 = vld [vmem:[%s1 + $0x60] sm:$0xf]
        %v310 = vld [vmem:[%s1 + $0x64] sm:$0xf]
        %v311 = vld [vmem:[%s1 + $0x68] sm:$0xf]
        %v312 = vld [vmem:[%s1 + $0x6c] sm:$0xf]
        %v313 = vld [vmem:[%s1 + $0x70] sm:$0xf]
        %v314 = vld [vmem:[%s1 + $0x74] sm:$0xf]
        %v315 = vld [vmem:[%s1 + $0x78] sm:$0xf]
        %v316 = vld [vmem:[%s1 + $0x7c] sm:$0xf]
        %v317 = vld [vmem:[%s2] sm:$0x1]
        %v319 = vlaneseq
        %v320 = vshrl.u32 %v319, 7
        %v321 = vsub.s32 0, %v320
        %v322 = vrot.slane %v317, %v321
        %v356 = vunpack.c.l.b16 %v253
        %v357 = vunpack.c.h.b16 %v253
        %v358 = vunpack.c.l.b16 %v254
        %v359 = vunpack.c.h.b16 %v254
        %v360 = vunpack.c.l.b16 %v255
        %v361 = vunpack.c.h.b16 %v255
        %v362 = vunpack.c.l.b16 %v256
        %v363 = vunpack.c.h.b16 %v256
        %v364 = vunpack.c.l.b16 %v257
        %v365 = vunpack.c.h.b16 %v257
        %v366 = vunpack.c.l.b16 %v258
        %v367 = vunpack.c.h.b16 %v258
        %v368 = vunpack.c.l.b16 %v259
        %v369 = vunpack.c.h.b16 %v259
        %v370 = vunpack.c.l.b16 %v260
        %v371 = vunpack.c.h.b16 %v260
        %v372 = vunpack.c.l.b16 %v261
        %v373 = vunpack.c.h.b16 %v261
        %v374 = vunpack.c.l.b16 %v262
        %v375 = vunpack.c.h.b16 %v262
        %v376 = vunpack.c.l.b16 %v263
        %v377 = vunpack.c.h.b16 %v263
        %v378 = vunpack.c.l.b16 %v264
        %v379 = vunpack.c.h.b16 %v264
        %v380 = vunpack.c.l.b16 %v265
        %v381 = vunpack.c.h.b16 %v265
        %v382 = vunpack.c.l.b16 %v266
        %v383 = vunpack.c.h.b16 %v266
        %v384 = vunpack.c.l.b16 %v267
        %v385 = vunpack.c.h.b16 %v267
        %v386 = vunpack.c.l.b16 %v268
        %v387 = vunpack.c.h.b16 %v268
        %v388 = vunpack.c.l.b16 %v269
        %v389 = vunpack.c.h.b16 %v269
        %v390 = vunpack.c.l.b16 %v270
        %v391 = vunpack.c.h.b16 %v270
        %v392 = vunpack.c.l.b16 %v271
        %v393 = vunpack.c.h.b16 %v271
        %v394 = vunpack.c.l.b16 %v272
        %v395 = vunpack.c.h.b16 %v272
        %v396 = vunpack.c.l.b16 %v273
        %v397 = vunpack.c.h.b16 %v273
        %v398 = vunpack.c.l.b16 %v274
        %v399 = vunpack.c.h.b16 %v274
        %v400 = vunpack.c.l.b16 %v275
        %v401 = vunpack.c.h.b16 %v275
        %v402 = vunpack.c.l.b16 %v276
        %v403 = vunpack.c.h.b16 %v276
        %v404 = vunpack.c.l.b16 %v277
        %v405 = vunpack.c.h.b16 %v277
        %v406 = vunpack.c.l.b16 %v278
        %v407 = vunpack.c.h.b16 %v278
        %v408 = vunpack.c.l.b16 %v279
        %v409 = vunpack.c.h.b16 %v279
        %v410 = vunpack.c.l.b16 %v280
        %v411 = vunpack.c.h.b16 %v280
        %v412 = vunpack.c.l.b16 %v281
        %v413 = vunpack.c.h.b16 %v281
        %v414 = vunpack.c.l.b16 %v282
        %v415 = vunpack.c.h.b16 %v282
        %v416 = vunpack.c.l.b16 %v283
        %v417 = vunpack.c.h.b16 %v283
        %v418 = vunpack.c.l.b16 %v284
        %v419 = vunpack.c.h.b16 %v284
        %v420 = vpack.c.b16 %v358, %v356
        %v421 = vpack.c.b16 %v359, %v357
        %v422 = vpack.c.b16 %v362, %v360
        %v423 = vpack.c.b16 %v363, %v361
        %v424 = vpack.c.b16 %v366, %v364
        %v425 = vpack.c.b16 %v367, %v365
        %v426 = vpack.c.b16 %v370, %v368
        %v427 = vpack.c.b16 %v371, %v369
        %v428 = vpack.c.b16 %v374, %v372
        %v429 = vpack.c.b16 %v375, %v373
        %v430 = vpack.c.b16 %v378, %v376
        %v431 = vpack.c.b16 %v379, %v377
        %v432 = vpack.c.b16 %v382, %v380
        %v433 = vpack.c.b16 %v383, %v381
        %v434 = vpack.c.b16 %v386, %v384
        %v435 = vpack.c.b16 %v387, %v385
        %v436 = vpack.c.b16 %v390, %v388
        %v437 = vpack.c.b16 %v391, %v389
        %v438 = vpack.c.b16 %v394, %v392
        %v439 = vpack.c.b16 %v395, %v393
        %v440 = vpack.c.b16 %v398, %v396
        %v441 = vpack.c.b16 %v399, %v397
        %v442 = vpack.c.b16 %v402, %v400
        %v443 = vpack.c.b16 %v403, %v401
        %v444 = vpack.c.b16 %v406, %v404
        %v445 = vpack.c.b16 %v407, %v405
        %v446 = vpack.c.b16 %v410, %v408
        %v447 = vpack.c.b16 %v411, %v409
        %v448 = vpack.c.b16 %v414, %v412
        %v449 = vpack.c.b16 %v415, %v413
        %v450 = vpack.c.b16 %v418, %v416
        %v451 = vpack.c.b16 %v419, %v417
        %v516 = vunpack.c.l.b16 %v285
        %v517 = vunpack.c.l.b16 %v286
        %v518 = vunpack.c.l.b16 %v287
        %v519 = vunpack.c.l.b16 %v288
        %v520 = vunpack.c.l.b16 %v289
        %v521 = vunpack.c.l.b16 %v290
        %v522 = vunpack.c.l.b16 %v291
        %v523 = vunpack.c.l.b16 %v292
        %v524 = vunpack.c.l.b16 %v293
        %v525 = vunpack.c.l.b16 %v294
        %v526 = vunpack.c.l.b16 %v295
        %v527 = vunpack.c.l.b16 %v296
        %v528 = vunpack.c.l.b16 %v297
        %v529 = vunpack.c.l.b16 %v298
        %v530 = vunpack.c.l.b16 %v299
        %v531 = vunpack.c.l.b16 %v300
        %v532 = vunpack.c.l.b16 %v301
        %v533 = vunpack.c.l.b16 %v302
        %v534 = vunpack.c.l.b16 %v303
        %v535 = vunpack.c.l.b16 %v304
        %v536 = vunpack.c.l.b16 %v305
        %v537 = vunpack.c.l.b16 %v306
        %v538 = vunpack.c.l.b16 %v307
        %v539 = vunpack.c.l.b16 %v308
        %v540 = vunpack.c.l.b16 %v309
        %v541 = vunpack.c.l.b16 %v310
        %v542 = vunpack.c.l.b16 %v311
        %v543 = vunpack.c.l.b16 %v312
        %v544 = vunpack.c.l.b16 %v313
        %v545 = vunpack.c.l.b16 %v314
        %v546 = vunpack.c.l.b16 %v315
        %v547 = vunpack.c.l.b16 %v316
        %v548 = vpack.c.b16 %v517, %v516
        %v549 = vpack.c.b16 %v519, %v518
        %v550 = vpack.c.b16 %v521, %v520
        %v551 = vpack.c.b16 %v523, %v522
        %v552 = vpack.c.b16 %v525, %v524
        %v553 = vpack.c.b16 %v527, %v526
        %v554 = vpack.c.b16 %v529, %v528
        %v555 = vpack.c.b16 %v531, %v530
        %v556 = vpack.c.b16 %v533, %v532
        %v557 = vpack.c.b16 %v535, %v534
        %v558 = vpack.c.b16 %v537, %v536
        %v559 = vpack.c.b16 %v539, %v538
        %v560 = vpack.c.b16 %v541, %v540
        %v561 = vpack.c.b16 %v543, %v542
        %v562 = vpack.c.b16 %v545, %v544
        %v563 = vpack.c.b16 %v547, %v546
        %580 = vmatprep.subr.bf16.mxu0 0
        %581 = vmatpush1.bf16.msra.mxu0 %v548
        %582 = vmatprep.subr.bf16.mxu0 0
        %583 = vmatpush1.bf16.msra.mxu0 %v549
        %584 = vmatprep.subr.bf16.mxu0 0
        %585 = vmatpush1.bf16.msra.mxu0 %v550
        %586 = vmatprep.subr.bf16.mxu0 0
        %587 = vmatpush1.bf16.msra.mxu0 %v551
        %588 = vmatprep.subr.bf16.mxu0 0
        %589 = vmatpush1.bf16.msra.mxu0 %v552
        %590 = vmatprep.subr.bf16.mxu0 0
        %591 = vmatpush1.bf16.msra.mxu0 %v553
        %592 = vmatprep.subr.bf16.mxu0 0
        %593 = vmatpush1.bf16.msra.mxu0 %v554
        %594 = vmatprep.subr.bf16.mxu0 0
        %595 = vmatpush1.bf16.msra.mxu0 %v555
        %596 = vmatprep.subr.bf16.mxu0 0
        %597 = vmatpush1.bf16.msra.mxu0 %v556
        %598 = vmatprep.subr.bf16.mxu0 0
        %599 = vmatpush1.bf16.msra.mxu0 %v557
        %600 = vmatprep.subr.bf16.mxu0 0
        %601 = vmatpush1.bf16.msra.mxu0 %v558
        %602 = vmatprep.subr.bf16.mxu0 0
        %603 = vmatpush1.bf16.msra.mxu0 %v559
        %604 = vmatprep.subr.bf16.mxu0 0
        %605 = vmatpush1.bf16.msra.mxu0 %v560
        %606 = vmatprep.subr.bf16.mxu0 0
        %607 = vmatpush1.bf16.msra.mxu0 %v561
        %608 = vmatprep.subr.bf16.mxu0 0
        %609 = vmatpush1.bf16.msra.mxu0 %v562
        %610 = vmatprep.subr.bf16.mxu0 0
        %611 = vmatpush1.bf16.msra.mxu0 %v563
        %612 = vmatprep.mubr.bf16.mxu0 %v421
        %613 = vmatmul.mubr.bf16.gmra.mrb[0].mxu0 %v420
        %v614 = vpop.f32.mrb[0].mxu0
        %v615 = vadd.f32 %v322, %v614
        %v616 = vpop.f32.mrb[0].mxu0
        %v617 = vpop.f32.mrb[0].mxu0
        %v618 = vadd.f32 %v322, %v617
        %v619 = vpop.f32.mrb[0].mxu0
        %620 = vmatprep.mubr.bf16.mxu0 %v423
        %621 = vmatmul.mubr.bf16.gmra.mrb[0].mxu0 %v422
        %v622 = vpop.f32.mrb[0].mxu0
        %v623 = vadd.f32 %v322, %v622
        %v624 = vpop.f32.mrb[0].mxu0
        %v625 = vpop.f32.mrb[0].mxu0
        %v626 = vadd.f32 %v322, %v625
        %v627 = vpop.f32.mrb[0].mxu0
        %628 = vmatprep.mubr.bf16.mxu0 %v425
        %629 = vmatmul.mubr.bf16.gmra.mrb[0].mxu0 %v424
        %v630 = vpop.f32.mrb[0].mxu0
        %v631 = vadd.f32 %v322, %v630
        %v632 = vpop.f32.mrb[0].mxu0
        %v633 = vpop.f32.mrb[0].mxu0
        %v634 = vadd.f32 %v322, %v633
        %v635 = vpop.f32.mrb[0].mxu0
        %636 = vmatprep.mubr.bf16.mxu0 %v427
        %637 = vmatmul.mubr.bf16.gmra.mrb[0].mxu0 %v426
        %v638 = vpop.f32.mrb[0].mxu0
        %v639 = vadd.f32 %v322, %v638
        %v640 = vpop.f32.mrb[0].mxu0
        %v641 = vpop.f32.mrb[0].mxu0
        %v642 = vadd.f32 %v322, %v641
        %v643 = vpop.f32.mrb[0].mxu0
        %644 = vmatprep.mubr.bf16.mxu0 %v429
        %645 = vmatmul.mubr.bf16.gmra.mrb[0].mxu0 %v428
        %v646 = vpop.f32.mrb[0].mxu0
        %v647 = vadd.f32 %v322, %v646
        %v648 = vpop.f32.mrb[0].mxu0
        %v649 = vpop.f32.mrb[0].mxu0
        %v650 = vadd.f32 %v322, %v649
        %v651 = vpop.f32.mrb[0].mxu0
        %652 = vmatprep.mubr.bf16.mxu0 %v431
        %653 = vmatmul.mubr.bf16.gmra.mrb[0].mxu0 %v430
        %v654 = vpop.f32.mrb[0].mxu0
        %v655 = vadd.f32 %v322, %v654
        %v656 = vpop.f32.mrb[0].mxu0
        %v657 = vpop.f32.mrb[0].mxu0
        %v658 = vadd.f32 %v322, %v657
        %v659 = vpop.f32.mrb[0].mxu0
        %660 = vmatprep.mubr.bf16.mxu0 %v433
        %661 = vmatmul.mubr.bf16.gmra.mrb[0].mxu0 %v432
        %v662 = vpop.f32.mrb[0].mxu0
        %v663 = vadd.f32 %v322, %v662
        %v664 = vpop.f32.mrb[0].mxu0
        %v665 = vpop.f32.mrb[0].mxu0
        %v666 = vadd.f32 %v322, %v665
        %v667 = vpop.f32.mrb[0].mxu0
        %668 = vmatprep.mubr.bf16.mxu0 %v435
        %669 = vmatmul.mubr.bf16.gmra.mrb[0].mxu0 %v434
        %v670 = vpop.f32.mrb[0].mxu0
        %v671 = vadd.f32 %v322, %v670
        %v672 = vpop.f32.mrb[0].mxu0
        %v673 = vpop.f32.mrb[0].mxu0
        %v674 = vadd.f32 %v322, %v673
        %v675 = vpop.f32.mrb[0].mxu0
        %676 = vmatprep.mubr.bf16.mxu0 %v437
        %677 = vmatmul.mubr.bf16.gmra.mrb[0].mxu0 %v436
        %v678 = vpop.f32.mrb[0].mxu0
        %v679 = vadd.f32 %v322, %v678
        %v680 = vpop.f32.mrb[0].mxu0
        %v681 = vpop.f32.mrb[0].mxu0
        %v682 = vadd.f32 %v322, %v681
        %v683 = vpop.f32.mrb[0].mxu0
        %684 = vmatprep.mubr.bf16.mxu0 %v439
        %685 = vmatmul.mubr.bf16.gmra.mrb[0].mxu0 %v438
        %v686 = vpop.f32.mrb[0].mxu0
        %v687 = vadd.f32 %v322, %v686
        %v688 = vpop.f32.mrb[0].mxu0
        %v689 = vpop.f32.mrb[0].mxu0
        %v690 = vadd.f32 %v322, %v689
        %v691 = vpop.f32.mrb[0].mxu0
        %692 = vmatprep.mubr.bf16.mxu0 %v441
        %693 = vmatmul.mubr.bf16.gmra.mrb[0].mxu0 %v440
        %v694 = vpop.f32.mrb[0].mxu0
        %v695 = vadd.f32 %v322, %v694
        %v696 = vpop.f32.mrb[0].mxu0
        %v697 = vpop.f32.mrb[0].mxu0
        %v698 = vadd.f32 %v322, %v697
        %v699 = vpop.f32.mrb[0].mxu0
        %700 = vmatprep.mubr.bf16.mxu0 %v443
        %701 = vmatmul.mubr.bf16.gmra.mrb[0].mxu0 %v442
        %v702 = vpop.f32.mrb[0].mxu0
        %v703 = vadd.f32 %v322, %v702
        %v704 = vpop.f32.mrb[0].mxu0
        %v705 = vpop.f32.mrb[0].mxu0
        %v706 = vadd.f32 %v322, %v705
        %v707 = vpop.f32.mrb[0].mxu0
        %708 = vmatprep.mubr.bf16.mxu0 %v445
        %709 = vmatmul.mubr.bf16.gmra.mrb[0].mxu0 %v444
        %v710 = vpop.f32.mrb[0].mxu0
        %v711 = vadd.f32 %v322, %v710
        %v712 = vpop.f32.mrb[0].mxu0
        %v713 = vpop.f32.mrb[0].mxu0
        %v714 = vadd.f32 %v322, %v713
        %v715 = vpop.f32.mrb[0].mxu0
        %716 = vmatprep.mubr.bf16.mxu0 %v447
        %717 = vmatmul.mubr.bf16.gmra.mrb[0].mxu0 %v446
        %v718 = vpop.f32.mrb[0].mxu0
        %v719 = vadd.f32 %v322, %v718
        %v720 = vpop.f32.mrb[0].mxu0
        %v721 = vpop.f32.mrb[0].mxu0
        %v722 = vadd.f32 %v322, %v721
        %v723 = vpop.f32.mrb[0].mxu0
        %724 = vmatprep.mubr.bf16.mxu0 %v449
        %725 = vmatmul.mubr.bf16.gmra.mrb[0].mxu0 %v448
        %v726 = vpop.f32.mrb[0].mxu0
        %v727 = vadd.f32 %v322, %v726
        %v728 = vpop.f32.mrb[0].mxu0
        %v729 = vpop.f32.mrb[0].mxu0
        %v730 = vadd.f32 %v322, %v729
        %v731 = vpop.f32.mrb[0].mxu0
        %732 = vmatprep.mubr.bf16.mxu0 %v451
        %733 = vmatmul.mubr.bf16.gmra.mrb[0].mxu0 %v450
        %v734 = vpop.f32.mrb[0].mxu0
        %v735 = vadd.f32 %v322, %v734
        %v736 = vpop.f32.mrb[0].mxu0
        %v737 = vpop.f32.mrb[0].mxu0
        %v738 = vadd.f32 %v322, %v737
        %v739 = vpop.f32.mrb[0].mxu0
        %740 = vdwg.mxu0
        %v741 = vmax.f32 %v615, 0.0
        %v742 = vmax.f32 %v618, 0.0
        %v743 = vmax.f32 %v623, 0.0
        %v744 = vmax.f32 %v626, 0.0
        %v745 = vmax.f32 %v631, 0.0
        %v746 = vmax.f32 %v634, 0.0
        %v747 = vmax.f32 %v639, 0.0
        %v748 = vmax.f32 %v642, 0.0
        %v749 = vmax.f32 %v647, 0.0
        %v750 = vmax.f32 %v650, 0.0
        %v751 = vmax.f32 %v655, 0.0
        %v752 = vmax.f32 %v658, 0.0
        %v753 = vmax.f32 %v663, 0.0
        %v754 = vmax.f32 %v666, 0.0
        %v755 = vmax.f32 %v671, 0.0
        %v756 = vmax.f32 %v674, 0.0
        %v757 = vmax.f32 %v679, 0.0
        %v758 = vmax.f32 %v682, 0.0
        %v759 = vmax.f32 %v687, 0.0
        %v760 = vmax.f32 %v690, 0.0
        %v761 = vmax.f32 %v695, 0.0
        %v762 = vmax.f32 %v698, 0.0
        %v763 = vmax.f32 %v703, 0.0
        %v764 = vmax.f32 %v706, 0.0
        %v765 = vmax.f32 %v711, 0.0
        %v766 = vmax.f32 %v714, 0.0
        %v767 = vmax.f32 %v719, 0.0
        %v768 = vmax.f32 %v722, 0.0
        %v769 = vmax.f32 %v727, 0.0
        %v770 = vmax.f32 %v730, 0.0
        %v771 = vmax.f32 %v735, 0.0
        %v772 = vmax.f32 %v738, 0.0
        %s773 = smul.u32 %s21, 256
        %v774 = vpack.c.bf16 %v742, %v741
        %v775 = vpack.c.bf16 %v744, %v743
        %v776 = vpack.c.bf16 %v746, %v745
        %v777 = vpack.c.bf16 %v748, %v747
        %v778 = vpack.c.bf16 %v750, %v749
        %v779 = vpack.c.bf16 %v752, %v751
        %v780 = vpack.c.bf16 %v754, %v753
        %v781 = vpack.c.bf16 %v756, %v755
        %v782 = vpack.c.bf16 %v758, %v757
        %v783 = vpack.c.bf16 %v760, %v759
        %v784 = vpack.c.bf16 %v762, %v761
        %v785 = vpack.c.bf16 %v764, %v763
        %v786 = vpack.c.bf16 %v766, %v765
        %v787 = vpack.c.bf16 %v768, %v767
        %v788 = vpack.c.bf16 %v770, %v769
        %v789 = vpack.c.bf16 %v772, %v771
        %s790 = sshra.s32 %s773, 4
        %s791 = sand.u32 %s773, 15
        %s792 = smul.addr %s790, 8
        %s793 = scalar_lea.vmem [#allocation2], %s792
        %794 = vst [vmem:[%s793] sm:$0xff] %v774
        %795 = vst [vmem:[%s793 + $0x8] sm:$0xff] %v775
        %796 = vst [vmem:[%s793 + $0x10] sm:$0xff] %v776
        %797 = vst [vmem:[%s793 + $0x18] sm:$0xff] %v777
        %798 = vst [vmem:[%s793 + $0x20] sm:$0xff] %v778
        %799 = vst [vmem:[%s793 + $0x28] sm:$0xff] %v779
        %800 = vst [vmem:[%s793 + $0x30] sm:$0xff] %v780
        %801 = vst [vmem:[%s793 + $0x38] sm:$0xff] %v781
        %802 = vst [vmem:[%s793 + $0x40] sm:$0xff] %v782
        %803 = vst [vmem:[%s793 + $0x48] sm:$0xff] %v783
        %804 = vst [vmem:[%s793 + $0x50] sm:$0xff] %v784
        %805 = vst [vmem:[%s793 + $0x58] sm:$0xff] %v785
        %806 = vst [vmem:[%s793 + $0x60] sm:$0xff] %v786
        %807 = vst [vmem:[%s793 + $0x68] sm:$0xff] %v787
        %808 = vst [vmem:[%s793 + $0x70] sm:$0xff] %v788
        %809 = vst [vmem:[%s793 + $0x78] sm:$0xff] %v789
      $region44: #{gcn_net_forward.1} parent=39 // pred_fallthru
        _
      %p810 = scmp.eq.s32.totalorder %s20, 1
      // Predicated region
      $region45: #{gcn_net_forward.1} parent=39 // pred_check
        %p811 = pneg %p810
      $region46: #{gcn_net_forward.1} parent=39 // pred_check_branch
        %813 = sbr.rel (%p811) target = $region48
      $region47: #{gcn_net_forward.1} parent=39 // pred_region
        %v814 = vld [vmem:[%s238] sm:$0xff]
        %v815 = vld [vmem:[%s238 + $0x8] sm:$0xff]
        %v816 = vld [vmem:[%s238 + $0x10] sm:$0xff]
        %v817 = vld [vmem:[%s238 + $0x18] sm:$0xff]
        %v818 = vld [vmem:[%s238 + $0x20] sm:$0xff]
        %v819 = vld [vmem:[%s238 + $0x28] sm:$0xff]
        %v820 = vld [vmem:[%s238 + $0x30] sm:$0xff]
        %v821 = vld [vmem:[%s238 + $0x38] sm:$0xff]
        %v822 = vld [vmem:[%s238 + $0x40] sm:$0xff]
        %v823 = vld [vmem:[%s238 + $0x48] sm:$0xff]
        %v824 = vld [vmem:[%s238 + $0x50] sm:$0xff]
        %v825 = vld [vmem:[%s238 + $0x58] sm:$0xff]
        %v826 = vld [vmem:[%s238 + $0x60] sm:$0xff]
        %v827 = vld [vmem:[%s238 + $0x68] sm:$0xff]
        %v828 = vld [vmem:[%s238 + $0x70] sm:$0xff]
        %v829 = vld [vmem:[%s238 + $0x78] sm:$0xff]
        %v830 = vld [vmem:[%s238 + $0x80] sm:$0xff]
        %v831 = vld [vmem:[%s238 + $0x88] sm:$0xff]
        %v832 = vld [vmem:[%s238 + $0x90] sm:$0xff]
        %v833 = vld [vmem:[%s238 + $0x98] sm:$0xff]
        %v834 = vld [vmem:[%s238 + $0xa0] sm:$0xff]
        %v835 = vld [vmem:[%s238 + $0xa8] sm:$0xff]
        %v836 = vld [vmem:[%s238 + $0xb0] sm:$0xff]
        %v837 = vld [vmem:[%s238 + $0xb8] sm:$0xff]
        %v838 = vld [vmem:[%s238 + $0xc0] sm:$0xff]
        %v839 = vld [vmem:[%s238 + $0xc8] sm:$0xff]
        %v840 = vld [vmem:[%s238 + $0xd0] sm:$0xff]
        %v841 = vld [vmem:[%s238 + $0xd8] sm:$0xff]
        %v842 = vld [vmem:[%s238 + $0xe0] sm:$0xff]
        %v843 = vld [vmem:[%s238 + $0xe8] sm:$0xff]
        %v844 = vld [vmem:[%s238 + $0xf0] sm:$0xff]
        %v845 = vld [vmem:[%s238 + $0xf8] sm:$0xff]
        %v846 = vld [vmem:[#allocation2] sm:$0xff]
        %v847 = vld [vmem:[#allocation2 + $0x8] sm:$0xff]
        %v848 = vld [vmem:[#allocation2 + $0x10] sm:$0xff]
        %v849 = vld [vmem:[#allocation2 + $0x18] sm:$0xff]
        %v850 = vld [vmem:[#allocation2 + $0x20] sm:$0xff]
        %v851 = vld [vmem:[#allocation2 + $0x28] sm:$0xff]
        %v852 = vld [vmem:[#allocation2 + $0x30] sm:$0xff]
        %v853 = vld [vmem:[#allocation2 + $0x38] sm:$0xff]
        %v854 = vld [vmem:[#allocation2 + $0x40] sm:$0xff]
        %v855 = vld [vmem:[#allocation2 + $0x48] sm:$0xff]
        %v856 = vld [vmem:[#allocation2 + $0x50] sm:$0xff]
        %v857 = vld [vmem:[#allocation2 + $0x58] sm:$0xff]
        %v858 = vld [vmem:[#allocation2 + $0x60] sm:$0xff]
        %v859 = vld [vmem:[#allocation2 + $0x68] sm:$0xff]
        %v860 = vld [vmem:[#allocation2 + $0x70] sm:$0xff]
        %v861 = vld [vmem:[#allocation2 + $0x78] sm:$0xff]
        %v894 = vunpack.c.l.b16 %v814
        %v895 = vunpack.c.h.b16 %v814
        %v896 = vunpack.c.l.b16 %v815
        %v897 = vunpack.c.h.b16 %v815
        %v898 = vunpack.c.l.b16 %v816
        %v899 = vunpack.c.h.b16 %v816
        %v900 = vunpack.c.l.b16 %v817
        %v901 = vunpack.c.h.b16 %v817
        %v902 = vunpack.c.l.b16 %v818
        %v903 = vunpack.c.h.b16 %v818
        %v904 = vunpack.c.l.b16 %v819
        %v905 = vunpack.c.h.b16 %v819
        %v906 = vunpack.c.l.b16 %v820
        %v907 = vunpack.c.h.b16 %v820
        %v908 = vunpack.c.l.b16 %v821
        %v909 = vunpack.c.h.b16 %v821
        %v910 = vunpack.c.l.b16 %v822
        %v911 = vunpack.c.h.b16 %v822
        %v912 = vunpack.c.l.b16 %v823
        %v913 = vunpack.c.h.b16 %v823
        %v914 = vunpack.c.l.b16 %v824
        %v915 = vunpack.c.h.b16 %v824
        %v916 = vunpack.c.l.b16 %v825
        %v917 = vunpack.c.h.b16 %v825
        %v918 = vunpack.c.l.b16 %v826
        %v919 = vunpack.c.h.b16 %v826
        %v920 = vunpack.c.l.b16 %v827
        %v921 = vunpack.c.h.b16 %v827
        %v922 = vunpack.c.l.b16 %v828
        %v923 = vunpack.c.h.b16 %v828
        %v924 = vunpack.c.l.b16 %v829
        %v925 = vunpack.c.h.b16 %v829
        %v926 = vunpack.c.l.b16 %v830
        %v927 = vunpack.c.h.b16 %v830
        %v928 = vunpack.c.l.b16 %v831
        %v929 = vunpack.c.h.b16 %v831
        %v930 = vunpack.c.l.b16 %v832
        %v931 = vunpack.c.h.b16 %v832
        %v932 = vunpack.c.l.b16 %v833
        %v933 = vunpack.c.h.b16 %v833
        %v934 = vunpack.c.l.b16 %v834
        %v935 = vunpack.c.h.b16 %v834
        %v936 = vunpack.c.l.b16 %v835
        %v937 = vunpack.c.h.b16 %v835
        %v938 = vunpack.c.l.b16 %v836
        %v939 = vunpack.c.h.b16 %v836
        %v940 = vunpack.c.l.b16 %v837
        %v941 = vunpack.c.h.b16 %v837
        %v942 = vunpack.c.l.b16 %v838
        %v943 = vunpack.c.h.b16 %v838
        %v944 = vunpack.c.l.b16 %v839
        %v945 = vunpack.c.h.b16 %v839
        %v946 = vunpack.c.l.b16 %v840
        %v947 = vunpack.c.h.b16 %v840
        %v948 = vunpack.c.l.b16 %v841
        %v949 = vunpack.c.h.b16 %v841
        %v950 = vunpack.c.l.b16 %v842
        %v951 = vunpack.c.h.b16 %v842
        %v952 = vunpack.c.l.b16 %v843
        %v953 = vunpack.c.h.b16 %v843
        %v954 = vunpack.c.l.b16 %v844
        %v955 = vunpack.c.h.b16 %v844
        %v956 = vunpack.c.l.b16 %v845
        %v957 = vunpack.c.h.b16 %v845
        %v958 = vpack.c.b16 %v896, %v894
        %v959 = vpack.c.b16 %v897, %v895
        %v960 = vpack.c.b16 %v900, %v898
        %v961 = vpack.c.b16 %v901, %v899
        %v962 = vpack.c.b16 %v904, %v902
        %v963 = vpack.c.b16 %v905, %v903
        %v964 = vpack.c.b16 %v908, %v906
        %v965 = vpack.c.b16 %v909, %v907
        %v966 = vpack.c.b16 %v912, %v910
        %v967 = vpack.c.b16 %v913, %v911
        %v968 = vpack.c.b16 %v916, %v914
        %v969 = vpack.c.b16 %v917, %v915
        %v970 = vpack.c.b16 %v920, %v918
        %v971 = vpack.c.b16 %v921, %v919
        %v972 = vpack.c.b16 %v924, %v922
        %v973 = vpack.c.b16 %v925, %v923
        %v974 = vpack.c.b16 %v928, %v926
        %v975 = vpack.c.b16 %v929, %v927
        %v976 = vpack.c.b16 %v932, %v930
        %v977 = vpack.c.b16 %v933, %v931
        %v978 = vpack.c.b16 %v936, %v934
        %v979 = vpack.c.b16 %v937, %v935
        %v980 = vpack.c.b16 %v940, %v938
        %v981 = vpack.c.b16 %v941, %v939
        %v982 = vpack.c.b16 %v944, %v942
        %v983 = vpack.c.b16 %v945, %v943
        %v984 = vpack.c.b16 %v948, %v946
        %v985 = vpack.c.b16 %v949, %v947
        %v986 = vpack.c.b16 %v952, %v950
        %v987 = vpack.c.b16 %v953, %v951
        %v988 = vpack.c.b16 %v956, %v954
        %v989 = vpack.c.b16 %v957, %v955
        %1022 = vmatprep.subr.bf16.mxu0 0
        %1023 = vmatpush1.bf16.msra.mxu0 %v846
        %1024 = vmatprep.subr.bf16.mxu0 0
        %1025 = vmatpush1.bf16.msra.mxu0 %v847
        %1026 = vmatprep.subr.bf16.mxu0 0
        %1027 = vmatpush1.bf16.msra.mxu0 %v848
        %1028 = vmatprep.subr.bf16.mxu0 0
        %1029 = vmatpush1.bf16.msra.mxu0 %v849
        %1030 = vmatprep.subr.bf16.mxu0 0
        %1031 = vmatpush1.bf16.msra.mxu0 %v850
        %1032 = vmatprep.subr.bf16.mxu0 0
        %1033 = vmatpush1.bf16.msra.mxu0 %v851
        %1034 = vmatprep.subr.bf16.mxu0 0
        %1035 = vmatpush1.bf16.msra.mxu0 %v852
        %1036 = vmatprep.subr.bf16.mxu0 0
        %1037 = vmatpush1.bf16.msra.mxu0 %v853
        %1038 = vmatprep.subr.bf16.mxu0 0
        %1039 = vmatpush1.bf16.msra.mxu0 %v854
        %1040 = vmatprep.subr.bf16.mxu0 0
        %1041 = vmatpush1.bf16.msra.mxu0 %v855
        %1042 = vmatprep.subr.bf16.mxu0 0
        %1043 = vmatpush1.bf16.msra.mxu0 %v856
        %1044 = vmatprep.subr.bf16.mxu0 0
        %1045 = vmatpush1.bf16.msra.mxu0 %v857
        %1046 = vmatprep.subr.bf16.mxu0 0
        %1047 = vmatpush1.bf16.msra.mxu0 %v858
        %1048 = vmatprep.subr.bf16.mxu0 0
        %1049 = vmatpush1.bf16.msra.mxu0 %v859
        %1050 = vmatprep.subr.bf16.mxu0 0
        %1051 = vmatpush1.bf16.msra.mxu0 %v860
        %1052 = vmatprep.subr.bf16.mxu0 0
        %1053 = vmatpush1.bf16.msra.mxu0 %v861
        %1054 = vmatprep.mubr.bf16.mxu0 %v959
        %1055 = vmatmul.mubr.bf16.gmra.mrb[0].mxu0 %v958
        %v1056 = vpop.f32.mrb[0].mxu0
        %v1057 = vadd.f32 0.0, %v1056
        %v1058 = vpop.f32.mrb[0].mxu0
        %v1059 = vpop.f32.mrb[0].mxu0
        %v1060 = vadd.f32 0.0, %v1059
        %v1061 = vpop.f32.mrb[0].mxu0
        %1062 = vmatprep.mubr.bf16.mxu0 %v961
        %1063 = vmatmul.mubr.bf16.gmra.mrb[0].mxu0 %v960
        %v1064 = vpop.f32.mrb[0].mxu0
        %v1065 = vadd.f32 0.0, %v1064
        %v1066 = vpop.f32.mrb[0].mxu0
        %v1067 = vpop.f32.mrb[0].mxu0
        %v1068 = vadd.f32 0.0, %v1067
        %v1069 = vpop.f32.mrb[0].mxu0
        %1070 = vmatprep.mubr.bf16.mxu0 %v963
        %1071 = vmatmul.mubr.bf16.gmra.mrb[0].mxu0 %v962
        %v1072 = vpop.f32.mrb[0].mxu0
        %v1073 = vadd.f32 0.0, %v1072
        %v1074 = vpop.f32.mrb[0].mxu0
        %v1075 = vpop.f32.mrb[0].mxu0
        %v1076 = vadd.f32 0.0, %v1075
        %v1077 = vpop.f32.mrb[0].mxu0
        %1078 = vmatprep.mubr.bf16.mxu0 %v965
        %1079 = vmatmul.mubr.bf16.gmra.mrb[0].mxu0 %v964
        %v1080 = vpop.f32.mrb[0].mxu0
        %v1081 = vadd.f32 0.0, %v1080
        %v1082 = vpop.f32.mrb[0].mxu0
        %v1083 = vpop.f32.mrb[0].mxu0
        %v1084 = vadd.f32 0.0, %v1083
        %v1085 = vpop.f32.mrb[0].mxu0
        %1086 = vmatprep.mubr.bf16.mxu0 %v967
        %1087 = vmatmul.mubr.bf16.gmra.mrb[0].mxu0 %v966
        %v1088 = vpop.f32.mrb[0].mxu0
        %v1089 = vadd.f32 0.0, %v1088
        %v1090 = vpop.f32.mrb[0].mxu0
        %v1091 = vpop.f32.mrb[0].mxu0
        %v1092 = vadd.f32 0.0, %v1091
        %v1093 = vpop.f32.mrb[0].mxu0
        %1094 = vmatprep.mubr.bf16.mxu0 %v969
        %1095 = vmatmul.mubr.bf16.gmra.mrb[0].mxu0 %v968
        %v1096 = vpop.f32.mrb[0].mxu0
        %v1097 = vadd.f32 0.0, %v1096
        %v1098 = vpop.f32.mrb[0].mxu0
        %v1099 = vpop.f32.mrb[0].mxu0
        %v1100 = vadd.f32 0.0, %v1099
        %v1101 = vpop.f32.mrb[0].mxu0
        %1102 = vmatprep.mubr.bf16.mxu0 %v971
        %1103 = vmatmul.mubr.bf16.gmra.mrb[0].mxu0 %v970
        %v1104 = vpop.f32.mrb[0].mxu0
        %v1105 = vadd.f32 0.0, %v1104
        %v1106 = vpop.f32.mrb[0].mxu0
        %v1107 = vpop.f32.mrb[0].mxu0
        %v1108 = vadd.f32 0.0, %v1107
        %v1109 = vpop.f32.mrb[0].mxu0
        %1110 = vmatprep.mubr.bf16.mxu0 %v973
        %1111 = vmatmul.mubr.bf16.gmra.mrb[0].mxu0 %v972
        %v1112 = vpop.f32.mrb[0].mxu0
        %v1113 = vadd.f32 0.0, %v1112
        %v1114 = vpop.f32.mrb[0].mxu0
        %v1115 = vpop.f32.mrb[0].mxu0
        %v1116 = vadd.f32 0.0, %v1115
        %v1117 = vpop.f32.mrb[0].mxu0
        %1118 = vmatprep.mubr.bf16.mxu0 %v975
        %1119 = vmatmul.mubr.bf16.gmra.mrb[0].mxu0 %v974
        %v1120 = vpop.f32.mrb[0].mxu0
        %v1121 = vadd.f32 0.0, %v1120
        %v1122 = vpop.f32.mrb[0].mxu0
        %v1123 = vpop.f32.mrb[0].mxu0
        %v1124 = vadd.f32 0.0, %v1123
        %v1125 = vpop.f32.mrb[0].mxu0
        %1126 = vmatprep.mubr.bf16.mxu0 %v977
        %1127 = vmatmul.mubr.bf16.gmra.mrb[0].mxu0 %v976
        %v1128 = vpop.f32.mrb[0].mxu0
        %v1129 = vadd.f32 0.0, %v1128
        %v1130 = vpop.f32.mrb[0].mxu0
        %v1131 = vpop.f32.mrb[0].mxu0
        %v1132 = vadd.f32 0.0, %v1131
        %v1133 = vpop.f32.mrb[0].mxu0
        %1134 = vmatprep.mubr.bf16.mxu0 %v979
        %1135 = vmatmul.mubr.bf16.gmra.mrb[0].mxu0 %v978
        %v1136 = vpop.f32.mrb[0].mxu0
        %v1137 = vadd.f32 0.0, %v1136
        %v1138 = vpop.f32.mrb[0].mxu0
        %v1139 = vpop.f32.mrb[0].mxu0
        %v1140 = vadd.f32 0.0, %v1139
        %v1141 = vpop.f32.mrb[0].mxu0
        %1142 = vmatprep.mubr.bf16.mxu0 %v981
        %1143 = vmatmul.mubr.bf16.gmra.mrb[0].mxu0 %v980
        %v1144 = vpop.f32.mrb[0].mxu0
        %v1145 = vadd.f32 0.0, %v1144
        %v1146 = vpop.f32.mrb[0].mxu0
        %v1147 = vpop.f32.mrb[0].mxu0
        %v1148 = vadd.f32 0.0, %v1147
        %v1149 = vpop.f32.mrb[0].mxu0
        %1150 = vmatprep.mubr.bf16.mxu0 %v983
        %1151 = vmatmul.mubr.bf16.gmra.mrb[0].mxu0 %v982
        %v1152 = vpop.f32.mrb[0].mxu0
        %v1153 = vadd.f32 0.0, %v1152
        %v1154 = vpop.f32.mrb[0].mxu0
        %v1155 = vpop.f32.mrb[0].mxu0
        %v1156 = vadd.f32 0.0, %v1155
        %v1157 = vpop.f32.mrb[0].mxu0
        %1158 = vmatprep.mubr.bf16.mxu0 %v985
        %1159 = vmatmul.mubr.bf16.gmra.mrb[0].mxu0 %v984
        %v1160 = vpop.f32.mrb[0].mxu0
        %v1161 = vadd.f32 0.0, %v1160
        %v1162 = vpop.f32.mrb[0].mxu0
        %v1163 = vpop.f32.mrb[0].mxu0
        %v1164 = vadd.f32 0.0, %v1163
        %v1165 = vpop.f32.mrb[0].mxu0
        %1166 = vmatprep.mubr.bf16.mxu0 %v987
        %1167 = vmatmul.mubr.bf16.gmra.mrb[0].mxu0 %v986
        %v1168 = vpop.f32.mrb[0].mxu0
        %v1169 = vadd.f32 0.0, %v1168
        %v1170 = vpop.f32.mrb[0].mxu0
        %v1171 = vpop.f32.mrb[0].mxu0
        %v1172 = vadd.f32 0.0, %v1171
        %v1173 = vpop.f32.mrb[0].mxu0
        %1174 = vmatprep.mubr.bf16.mxu0 %v989
        %1175 = vmatmul.mubr.bf16.gmra.mrb[0].mxu0 %v988
        %v1176 = vpop.f32.mrb[0].mxu0
        %v1177 = vadd.f32 0.0, %v1176
        %v1178 = vpop.f32.mrb[0].mxu0
        %v1179 = vpop.f32.mrb[0].mxu0
        %v1180 = vadd.f32 0.0, %v1179
        %v1181 = vpop.f32.mrb[0].mxu0
        %1182 = vdwg.mxu0
        %v1183 = vld [vmem:[%s3] sm:$0xff]
        %v1184 = vld [vmem:[%s3 + $0x8] sm:$0xff]
        %v1185 = vld [vmem:[%s3 + $0x10] sm:$0xff]
        %v1186 = vld [vmem:[%s3 + $0x18] sm:$0xff]
        %v1187 = vld [vmem:[%s3 + $0x20] sm:$0xff]
        %v1188 = vld [vmem:[%s3 + $0x28] sm:$0xff]
        %v1189 = vld [vmem:[%s3 + $0x30] sm:$0xff]
        %v1190 = vld [vmem:[%s3 + $0x38] sm:$0xff]
        %v1191 = vld [vmem:[%s3 + $0x40] sm:$0xff]
        %v1192 = vld [vmem:[%s3 + $0x48] sm:$0xff]
        %v1193 = vld [vmem:[%s3 + $0x50] sm:$0xff]
        %v1194 = vld [vmem:[%s3 + $0x58] sm:$0xff]
        %v1195 = vld [vmem:[%s3 + $0x60] sm:$0xff]
        %v1196 = vld [vmem:[%s3 + $0x68] sm:$0xff]
        %v1197 = vld [vmem:[%s3 + $0x70] sm:$0xff]
        %v1198 = vld [vmem:[%s3 + $0x78] sm:$0xff]
        %v1199 = vld [vmem:[%s4] sm:$0x1]
        %v1201 = vlaneseq
        %v1202 = vshrl.u32 %v1201, 7
        %v1203 = vsub.s32 0, %v1202
        %v1204 = vrot.slane %v1199, %v1203
        %1206 = vmatprep.subr.mxu0 0.0
        %1207 = vmatpush1.msra.mxu0 %v1183
        %1208 = vmatprep.subr.mxu0 0.0
        %1209 = vmatpush1.msra.mxu0 %v1184
        %1210 = vmatprep.subr.mxu0 0.0
        %1211 = vmatpush1.msra.mxu0 %v1185
        %1212 = vmatprep.subr.mxu0 0.0
        %1213 = vmatpush1.msra.mxu0 %v1186
        %1214 = vmatprep.subr.mxu0 0.0
        %1215 = vmatpush1.msra.mxu0 %v1187
        %1216 = vmatprep.subr.mxu0 0.0
        %1217 = vmatpush1.msra.mxu0 %v1188
        %1218 = vmatprep.subr.mxu0 0.0
        %1219 = vmatpush1.msra.mxu0 %v1189
        %1220 = vmatprep.subr.mxu0 0.0
        %1221 = vmatpush1.msra.mxu0 %v1190
        %1222 = vmatprep.subr.mxu0 0.0
        %1223 = vmatpush1.msra.mxu0 %v1191
        %1224 = vmatprep.subr.mxu0 0.0
        %1225 = vmatpush1.msra.mxu0 %v1192
        %1226 = vmatprep.subr.mxu0 0.0
        %1227 = vmatpush1.msra.mxu0 %v1193
        %1228 = vmatprep.subr.mxu0 0.0
        %1229 = vmatpush1.msra.mxu0 %v1194
        %1230 = vmatprep.subr.mxu0 0.0
        %1231 = vmatpush1.msra.mxu0 %v1195
        %1232 = vmatprep.subr.mxu0 0.0
        %1233 = vmatpush1.msra.mxu0 %v1196
        %1234 = vmatprep.subr.mxu0 0.0
        %1235 = vmatpush1.msra.mxu0 %v1197
        %1236 = vmatprep.subr.mxu0 0.0
        %1237 = vmatpush1.msra.mxu0 %v1198
        %1238 = vmatprep.subr.mxu0 0.0
        %1239 = vmatpush1.msra.mxu0 0.0
        %1240 = vmatprep.subr.mxu0 0.0
        %1241 = vmatpush1.msra.mxu0 0.0
        %1242 = vmatprep.subr.mxu0 0.0
        %1243 = vmatpush1.msra.mxu0 0.0
        %1244 = vmatprep.subr.mxu0 0.0
        %1245 = vmatpush1.msra.mxu0 0.0
        %1246 = vmatprep.subr.mxu0 0.0
        %1247 = vmatpush1.msra.mxu0 0.0
        %1248 = vmatprep.subr.mxu0 0.0
        %1249 = vmatpush1.msra.mxu0 0.0
        %1250 = vmatprep.subr.mxu0 0.0
        %1251 = vmatpush1.msra.mxu0 0.0
        %1252 = vmatprep.subr.mxu0 0.0
        %1253 = vmatpush1.msra.mxu0 0.0
        %1254 = vmatprep.subr.mxu0 0.0
        %1255 = vmatpush1.msra.mxu0 0.0
        %1256 = vmatprep.subr.mxu0 0.0
        %1257 = vmatpush1.msra.mxu0 0.0
        %1258 = vmatprep.subr.mxu0 0.0
        %1259 = vmatpush1.msra.mxu0 0.0
        %1260 = vmatprep.subr.mxu0 0.0
        %1261 = vmatpush1.msra.mxu0 0.0
        %1262 = vmatprep.subr.mxu0 0.0
        %1263 = vmatpush1.msra.mxu0 0.0
        %1264 = vmatprep.subr.mxu0 0.0
        %1265 = vmatpush1.msra.mxu0 0.0
        %1266 = vmatprep.subr.mxu0 0.0
        %1267 = vmatpush1.msra.mxu0 0.0
        %1268 = vmatprep.subr.mxu0 0.0
        %1269 = vmatpush1.msra.mxu0 0.0
        %1270 = vmatprep.mubr.f32.mxu0 0.0
        %1271 = vmatmul.mubr.f32.gmra.mrb[0].mxu0 %v1057
        %v1272 = vpop.f32.mrb[0].mxu0
        %v1273 = vadd.f32 %v1204, %v1272
        %v1274 = vpop.f32.mrb[0].mxu0
        %1275 = vmatprep.mubr.f32.mxu0 0.0
        %1276 = vmatmul.mubr.f32.gmra.mrb[0].mxu0 %v1060
        %v1277 = vpop.f32.mrb[0].mxu0
        %v1278 = vadd.f32 %v1204, %v1277
        %v1279 = vpop.f32.mrb[0].mxu0
        %1280 = vmatprep.mubr.f32.mxu0 0.0
        %1281 = vmatmul.mubr.f32.gmra.mrb[0].mxu0 %v1065
        %v1282 = vpop.f32.mrb[0].mxu0
        %v1283 = vadd.f32 %v1204, %v1282
        %v1284 = vpop.f32.mrb[0].mxu0
        %1285 = vmatprep.mubr.f32.mxu0 0.0
        %1286 = vmatmul.mubr.f32.gmra.mrb[0].mxu0 %v1068
        %v1287 = vpop.f32.mrb[0].mxu0
        %v1288 = vadd.f32 %v1204, %v1287
        %v1289 = vpop.f32.mrb[0].mxu0
        %1290 = vmatprep.mubr.f32.mxu0 0.0
        %1291 = vmatmul.mubr.f32.gmra.mrb[0].mxu0 %v1073
        %v1292 = vpop.f32.mrb[0].mxu0
        %v1293 = vadd.f32 %v1204, %v1292
        %v1294 = vpop.f32.mrb[0].mxu0
        %1295 = vmatprep.mubr.f32.mxu0 0.0
        %1296 = vmatmul.mubr.f32.gmra.mrb[0].mxu0 %v1076
        %v1297 = vpop.f32.mrb[0].mxu0
        %v1298 = vadd.f32 %v1204, %v1297
        %v1299 = vpop.f32.mrb[0].mxu0
        %1300 = vmatprep.mubr.f32.mxu0 0.0
        %1301 = vmatmul.mubr.f32.gmra.mrb[0].mxu0 %v1081
        %v1302 = vpop.f32.mrb[0].mxu0
        %v1303 = vadd.f32 %v1204, %v1302
        %v1304 = vpop.f32.mrb[0].mxu0
        %1305 = vmatprep.mubr.f32.mxu0 0.0
        %1306 = vmatmul.mubr.f32.gmra.mrb[0].mxu0 %v1084
        %v1307 = vpop.f32.mrb[0].mxu0
        %v1308 = vadd.f32 %v1204, %v1307
        %v1309 = vpop.f32.mrb[0].mxu0
        %1310 = vmatprep.mubr.f32.mxu0 0.0
        %1311 = vmatmul.mubr.f32.gmra.mrb[0].mxu0 %v1089
        %v1312 = vpop.f32.mrb[0].mxu0
        %v1313 = vadd.f32 %v1204, %v1312
        %v1314 = vpop.f32.mrb[0].mxu0
        %1315 = vmatprep.mubr.f32.mxu0 0.0
        %1316 = vmatmul.mubr.f32.gmra.mrb[0].mxu0 %v1092
        %v1317 = vpop.f32.mrb[0].mxu0
        %v1318 = vadd.f32 %v1204, %v1317
        %v1319 = vpop.f32.mrb[0].mxu0
        %1320 = vmatprep.mubr.f32.mxu0 0.0
        %1321 = vmatmul.mubr.f32.gmra.mrb[0].mxu0 %v1097
        %v1322 = vpop.f32.mrb[0].mxu0
        %v1323 = vadd.f32 %v1204, %v1322
        %v1324 = vpop.f32.mrb[0].mxu0
        %1325 = vmatprep.mubr.f32.mxu0 0.0
        %1326 = vmatmul.mubr.f32.gmra.mrb[0].mxu0 %v1100
        %v1327 = vpop.f32.mrb[0].mxu0
        %v1328 = vadd.f32 %v1204, %v1327
        %v1329 = vpop.f32.mrb[0].mxu0
        %1330 = vmatprep.mubr.f32.mxu0 0.0
        %1331 = vmatmul.mubr.f32.gmra.mrb[0].mxu0 %v1105
        %v1332 = vpop.f32.mrb[0].mxu0
        %v1333 = vadd.f32 %v1204, %v1332
        %v1334 = vpop.f32.mrb[0].mxu0
        %1335 = vmatprep.mubr.f32.mxu0 0.0
        %1336 = vmatmul.mubr.f32.gmra.mrb[0].mxu0 %v1108
        %v1337 = vpop.f32.mrb[0].mxu0
        %v1338 = vadd.f32 %v1204, %v1337
        %v1339 = vpop.f32.mrb[0].mxu0
        %1340 = vmatprep.mubr.f32.mxu0 0.0
        %1341 = vmatmul.mubr.f32.gmra.mrb[0].mxu0 %v1113
        %v1342 = vpop.f32.mrb[0].mxu0
        %v1343 = vadd.f32 %v1204, %v1342
        %v1344 = vpop.f32.mrb[0].mxu0
        %1345 = vmatprep.mubr.f32.mxu0 0.0
        %1346 = vmatmul.mubr.f32.gmra.mrb[0].mxu0 %v1116
        %v1347 = vpop.f32.mrb[0].mxu0
        %v1348 = vadd.f32 %v1204, %v1347
        %v1349 = vpop.f32.mrb[0].mxu0
        %1350 = vmatprep.mubr.f32.mxu0 0.0
        %1351 = vmatmul.mubr.f32.gmra.mrb[0].mxu0 %v1121
        %v1352 = vpop.f32.mrb[0].mxu0
        %v1353 = vadd.f32 %v1204, %v1352
        %v1354 = vpop.f32.mrb[0].mxu0
        %1355 = vmatprep.mubr.f32.mxu0 0.0
        %1356 = vmatmul.mubr.f32.gmra.mrb[0].mxu0 %v1124
        %v1357 = vpop.f32.mrb[0].mxu0
        %v1358 = vadd.f32 %v1204, %v1357
        %v1359 = vpop.f32.mrb[0].mxu0
        %1360 = vmatprep.mubr.f32.mxu0 0.0
        %1361 = vmatmul.mubr.f32.gmra.mrb[0].mxu0 %v1129
        %v1362 = vpop.f32.mrb[0].mxu0
        %v1363 = vadd.f32 %v1204, %v1362
        %v1364 = vpop.f32.mrb[0].mxu0
        %1365 = vmatprep.mubr.f32.mxu0 0.0
        %1366 = vmatmul.mubr.f32.gmra.mrb[0].mxu0 %v1132
        %v1367 = vpop.f32.mrb[0].mxu0
        %v1368 = vadd.f32 %v1204, %v1367
        %v1369 = vpop.f32.mrb[0].mxu0
        %1370 = vmatprep.mubr.f32.mxu0 0.0
        %1371 = vmatmul.mubr.f32.gmra.mrb[0].mxu0 %v1137
        %v1372 = vpop.f32.mrb[0].mxu0
        %v1373 = vadd.f32 %v1204, %v1372
        %v1374 = vpop.f32.mrb[0].mxu0
        %1375 = vmatprep.mubr.f32.mxu0 0.0
        %1376 = vmatmul.mubr.f32.gmra.mrb[0].mxu0 %v1140
        %v1377 = vpop.f32.mrb[0].mxu0
        %v1378 = vadd.f32 %v1204, %v1377
        %v1379 = vpop.f32.mrb[0].mxu0
        %1380 = vmatprep.mubr.f32.mxu0 0.0
        %1381 = vmatmul.mubr.f32.gmra.mrb[0].mxu0 %v1145
        %v1382 = vpop.f32.mrb[0].mxu0
        %v1383 = vadd.f32 %v1204, %v1382
        %v1384 = vpop.f32.mrb[0].mxu0
        %1385 = vmatprep.mubr.f32.mxu0 0.0
        %1386 = vmatmul.mubr.f32.gmra.mrb[0].mxu0 %v1148
        %v1387 = vpop.f32.mrb[0].mxu0
        %v1388 = vadd.f32 %v1204, %v1387
        %v1389 = vpop.f32.mrb[0].mxu0
        %1390 = vmatprep.mubr.f32.mxu0 0.0
        %1391 = vmatmul.mubr.f32.gmra.mrb[0].mxu0 %v1153
        %v1392 = vpop.f32.mrb[0].mxu0
        %v1393 = vadd.f32 %v1204, %v1392
        %v1394 = vpop.f32.mrb[0].mxu0
        %1395 = vmatprep.mubr.f32.mxu0 0.0
        %1396 = vmatmul.mubr.f32.gmra.mrb[0].mxu0 %v1156
        %v1397 = vpop.f32.mrb[0].mxu0
        %v1398 = vadd.f32 %v1204, %v1397
        %v1399 = vpop.f32.mrb[0].mxu0
        %1400 = vmatprep.mubr.f32.mxu0 0.0
        %1401 = vmatmul.mubr.f32.gmra.mrb[0].mxu0 %v1161
        %v1402 = vpop.f32.mrb[0].mxu0
        %v1403 = vadd.f32 %v1204, %v1402
        %v1404 = vpop.f32.mrb[0].mxu0
        %1405 = vmatprep.mubr.f32.mxu0 0.0
        %1406 = vmatmul.mubr.f32.gmra.mrb[0].mxu0 %v1164
        %v1407 = vpop.f32.mrb[0].mxu0
        %v1408 = vadd.f32 %v1204, %v1407
        %v1409 = vpop.f32.mrb[0].mxu0
        %1410 = vmatprep.mubr.f32.mxu0 0.0
        %1411 = vmatmul.mubr.f32.gmra.mrb[0].mxu0 %v1169
        %v1412 = vpop.f32.mrb[0].mxu0
        %v1413 = vadd.f32 %v1204, %v1412
        %v1414 = vpop.f32.mrb[0].mxu0
        %1415 = vmatprep.mubr.f32.mxu0 0.0
        %1416 = vmatmul.mubr.f32.gmra.mrb[0].mxu0 %v1172
        %v1417 = vpop.f32.mrb[0].mxu0
        %v1418 = vadd.f32 %v1204, %v1417
        %v1419 = vpop.f32.mrb[0].mxu0
        %1420 = vmatprep.mubr.f32.mxu0 0.0
        %1421 = vmatmul.mubr.f32.gmra.mrb[0].mxu0 %v1177
        %v1422 = vpop.f32.mrb[0].mxu0
        %v1423 = vadd.f32 %v1204, %v1422
        %v1424 = vpop.f32.mrb[0].mxu0
        %1425 = vmatprep.mubr.f32.mxu0 0.0
        %1426 = vmatmul.mubr.f32.gmra.mrb[0].mxu0 %v1180
        %v1427 = vpop.f32.mrb[0].mxu0
        %v1428 = vadd.f32 %v1204, %v1427
        %v1429 = vpop.f32.mrb[0].mxu0
        %1430 = vdwg.mxu0
        %1431 = vmax.xlane.f32.xlu0 %v1273
        %v1432 = vpop.xlane.xlu0 %1431
        %1433 = vmax.xlane.f32.xlu0 %v1278
        %v1434 = vpop.xlane.xlu0 %1433
        %1435 = vmax.xlane.f32.xlu0 %v1283
        %v1436 = vpop.xlane.xlu0 %1435
        %1437 = vmax.xlane.f32.xlu0 %v1288
        %v1438 = vpop.xlane.xlu0 %1437
        %1439 = vmax.xlane.f32.xlu0 %v1293
        %v1440 = vpop.xlane.xlu0 %1439
        %1441 = vmax.xlane.f32.xlu0 %v1298
        %v1442 = vpop.xlane.xlu0 %1441
        %1443 = vmax.xlane.f32.xlu0 %v1303
        %v1444 = vpop.xlane.xlu0 %1443
        %1445 = vmax.xlane.f32.xlu0 %v1308
        %v1446 = vpop.xlane.xlu0 %1445
        %1447 = vmax.xlane.f32.xlu0 %v1313
        %v1448 = vpop.xlane.xlu0 %1447
        %1449 = vmax.xlane.f32.xlu0 %v1318
        %v1450 = vpop.xlane.xlu0 %1449
        %1451 = vmax.xlane.f32.xlu0 %v1323
        %v1452 = vpop.xlane.xlu0 %1451
        %1453 = vmax.xlane.f32.xlu0 %v1328
        %v1454 = vpop.xlane.xlu0 %1453
        %1455 = vmax.xlane.f32.xlu0 %v1333
        %v1456 = vpop.xlane.xlu0 %1455
        %1457 = vmax.xlane.f32.xlu0 %v1338
        %v1458 = vpop.xlane.xlu0 %1457
        %1459 = vmax.xlane.f32.xlu0 %v1343
        %v1460 = vpop.xlane.xlu0 %1459
        %1461 = vmax.xlane.f32.xlu0 %v1348
        %v1462 = vpop.xlane.xlu0 %1461
        %1463 = vmax.xlane.f32.xlu0 %v1353
        %v1464 = vpop.xlane.xlu0 %1463
        %1465 = vmax.xlane.f32.xlu0 %v1358
        %v1466 = vpop.xlane.xlu0 %1465
        %1467 = vmax.xlane.f32.xlu0 %v1363
        %v1468 = vpop.xlane.xlu0 %1467
        %1469 = vmax.xlane.f32.xlu0 %v1368
        %v1470 = vpop.xlane.xlu0 %1469
        %1471 = vmax.xlane.f32.xlu0 %v1373
        %v1472 = vpop.xlane.xlu0 %1471
        %1473 = vmax.xlane.f32.xlu0 %v1378
        %v1474 = vpop.xlane.xlu0 %1473
        %1475 = vmax.xlane.f32.xlu0 %v1383
        %v1476 = vpop.xlane.xlu0 %1475
        %1477 = vmax.xlane.f32.xlu0 %v1388
        %v1478 = vpop.xlane.xlu0 %1477
        %1479 = vmax.xlane.f32.xlu0 %v1393
        %v1480 = vpop.xlane.xlu0 %1479
        %1481 = vmax.xlane.f32.xlu0 %v1398
        %v1482 = vpop.xlane.xlu0 %1481
        %1483 = vmax.xlane.f32.xlu0 %v1403
        %v1484 = vpop.xlane.xlu0 %1483
        %1485 = vmax.xlane.f32.xlu0 %v1408
        %v1486 = vpop.xlane.xlu0 %1485
        %1487 = vmax.xlane.f32.xlu0 %v1413
        %v1488 = vpop.xlane.xlu0 %1487
        %1489 = vmax.xlane.f32.xlu0 %v1418
        %v1490 = vpop.xlane.xlu0 %1489
        %1491 = vmax.xlane.f32.xlu0 %v1423
        %v1492 = vpop.xlane.xlu0 %1491
        %1493 = vmax.xlane.f32.xlu0 %v1428
        %v1494 = vpop.xlane.xlu0 %1493
        %v1495 = vsub.f32 %v1273, %v1432
        %v1496 = vsub.f32 %v1278, %v1434
        %v1497 = vsub.f32 %v1283, %v1436
        %v1498 = vsub.f32 %v1288, %v1438
        %v1499 = vsub.f32 %v1293, %v1440
        %v1500 = vsub.f32 %v1298, %v1442
        %v1501 = vsub.f32 %v1303, %v1444
        %v1502 = vsub.f32 %v1308, %v1446
        %v1503 = vsub.f32 %v1313, %v1448
        %v1504 = vsub.f32 %v1318, %v1450
        %v1505 = vsub.f32 %v1323, %v1452
        %v1506 = vsub.f32 %v1328, %v1454
        %v1507 = vsub.f32 %v1333, %v1456
        %v1508 = vsub.f32 %v1338, %v1458
        %v1509 = vsub.f32 %v1343, %v1460
        %v1510 = vsub.f32 %v1348, %v1462
        %v1511 = vsub.f32 %v1353, %v1464
        %v1512 = vsub.f32 %v1358, %v1466
        %v1513 = vsub.f32 %v1363, %v1468
        %v1514 = vsub.f32 %v1368, %v1470
        %v1515 = vsub.f32 %v1373, %v1472
        %v1516 = vsub.f32 %v1378, %v1474
        %v1517 = vsub.f32 %v1383, %v1476
        %v1518 = vsub.f32 %v1388, %v1478
        %v1519 = vsub.f32 %v1393, %v1480
        %v1520 = vsub.f32 %v1398, %v1482
        %v1521 = vsub.f32 %v1403, %v1484
        %v1522 = vsub.f32 %v1408, %v1486
        %v1523 = vsub.f32 %v1413, %v1488
        %v1524 = vsub.f32 %v1418, %v1490
        %v1525 = vsub.f32 %v1423, %v1492
        %v1526 = vsub.f32 %v1428, %v1494
        %v1527 = vmul.f32 %v1495, 1.442695
        %v1528 = vpow.pop %v1527
        %v1529 = vmul.f32 %v1496, 1.442695
        %v1530 = vpow.pop %v1529
        %v1531 = vmul.f32 %v1497, 1.442695
        %v1532 = vpow.pop %v1531
        %v1533 = vmul.f32 %v1498, 1.442695
        %v1534 = vpow.pop %v1533
        %v1535 = vmul.f32 %v1499, 1.442695
        %v1536 = vpow.pop %v1535
        %v1537 = vmul.f32 %v1500, 1.442695
        %v1538 = vpow.pop %v1537
        %v1539 = vmul.f32 %v1501, 1.442695
        %v1540 = vpow.pop %v1539
        %v1541 = vmul.f32 %v1502, 1.442695
        %v1542 = vpow.pop %v1541
        %v1543 = vmul.f32 %v1503, 1.442695
        %v1544 = vpow.pop %v1543
        %v1545 = vmul.f32 %v1504, 1.442695
        %v1546 = vpow.pop %v1545
        %v1547 = vmul.f32 %v1505, 1.442695
        %v1548 = vpow.pop %v1547
        %v1549 = vmul.f32 %v1506, 1.442695
        %v1550 = vpow.pop %v1549
        %v1551 = vmul.f32 %v1507, 1.442695
        %v1552 = vpow.pop %v1551
        %v1553 = vmul.f32 %v1508, 1.442695
        %v1554 = vpow.pop %v1553
        %v1555 = vmul.f32 %v1509, 1.442695
        %v1556 = vpow.pop %v1555
        %v1557 = vmul.f32 %v1510, 1.442695
        %v1558 = vpow.pop %v1557
        %v1559 = vmul.f32 %v1511, 1.442695
        %v1560 = vpow.pop %v1559
        %v1561 = vmul.f32 %v1512, 1.442695
        %v1562 = vpow.pop %v1561
        %v1563 = vmul.f32 %v1513, 1.442695
        %v1564 = vpow.pop %v1563
        %v1565 = vmul.f32 %v1514, 1.442695
        %v1566 = vpow.pop %v1565
        %v1567 = vmul.f32 %v1515, 1.442695
        %v1568 = vpow.pop %v1567
        %v1569 = vmul.f32 %v1516, 1.442695
        %v1570 = vpow.pop %v1569
        %v1571 = vmul.f32 %v1517, 1.442695
        %v1572 = vpow.pop %v1571
        %v1573 = vmul.f32 %v1518, 1.442695
        %v1574 = vpow.pop %v1573
        %v1575 = vmul.f32 %v1519, 1.442695
        %v1576 = vpow.pop %v1575
        %v1577 = vmul.f32 %v1520, 1.442695
        %v1578 = vpow.pop %v1577
        %v1579 = vmul.f32 %v1521, 1.442695
        %v1580 = vpow.pop %v1579
        %v1581 = vmul.f32 %v1522, 1.442695
        %v1582 = vpow.pop %v1581
        %v1583 = vmul.f32 %v1523, 1.442695
        %v1584 = vpow.pop %v1583
        %v1585 = vmul.f32 %v1524, 1.442695
        %v1586 = vpow.pop %v1585
        %v1587 = vmul.f32 %v1525, 1.442695
        %v1588 = vpow.pop %v1587
        %v1589 = vmul.f32 %v1526, 1.442695
        %v1590 = vpow.pop %v1589
        %1591 = vadd.xlane.f32.xlu0 %v1528
        %v1592 = vpop.xlane.xlu0 %1591
        %1593 = vadd.xlane.f32.xlu0 %v1530
        %v1594 = vpop.xlane.xlu0 %1593
        %1595 = vadd.xlane.f32.xlu0 %v1532
        %v1596 = vpop.xlane.xlu0 %1595
        %1597 = vadd.xlane.f32.xlu0 %v1534
        %v1598 = vpop.xlane.xlu0 %1597
        %1599 = vadd.xlane.f32.xlu0 %v1536
        %v1600 = vpop.xlane.xlu0 %1599
        %1601 = vadd.xlane.f32.xlu0 %v1538
        %v1602 = vpop.xlane.xlu0 %1601
        %1603 = vadd.xlane.f32.xlu0 %v1540
        %v1604 = vpop.xlane.xlu0 %1603
        %1605 = vadd.xlane.f32.xlu0 %v1542
        %v1606 = vpop.xlane.xlu0 %1605
        %1607 = vadd.xlane.f32.xlu0 %v1544
        %v1608 = vpop.xlane.xlu0 %1607
        %1609 = vadd.xlane.f32.xlu0 %v1546
        %v1610 = vpop.xlane.xlu0 %1609
        %1611 = vadd.xlane.f32.xlu0 %v1548
        %v1612 = vpop.xlane.xlu0 %1611
        %1613 = vadd.xlane.f32.xlu0 %v1550
        %v1614 = vpop.xlane.xlu0 %1613
        %1615 = vadd.xlane.f32.xlu0 %v1552
        %v1616 = vpop.xlane.xlu0 %1615
        %1617 = vadd.xlane.f32.xlu0 %v1554
        %v1618 = vpop.xlane.xlu0 %1617
        %1619 = vadd.xlane.f32.xlu0 %v1556
        %v1620 = vpop.xlane.xlu0 %1619
        %1621 = vadd.xlane.f32.xlu0 %v1558
        %v1622 = vpop.xlane.xlu0 %1621
        %1623 = vadd.xlane.f32.xlu0 %v1560
        %v1624 = vpop.xlane.xlu0 %1623
        %1625 = vadd.xlane.f32.xlu0 %v1562
        %v1626 = vpop.xlane.xlu0 %1625
        %1627 = vadd.xlane.f32.xlu0 %v1564
        %v1628 = vpop.xlane.xlu0 %1627
        %1629 = vadd.xlane.f32.xlu0 %v1566
        %v1630 = vpop.xlane.xlu0 %1629
        %1631 = vadd.xlane.f32.xlu0 %v1568
        %v1632 = vpop.xlane.xlu0 %1631
        %1633 = vadd.xlane.f32.xlu0 %v1570
        %v1634 = vpop.xlane.xlu0 %1633
        %1635 = vadd.xlane.f32.xlu0 %v1572
        %v1636 = vpop.xlane.xlu0 %1635
        %1637 = vadd.xlane.f32.xlu0 %v1574
        %v1638 = vpop.xlane.xlu0 %1637
        %1639 = vadd.xlane.f32.xlu0 %v1576
        %v1640 = vpop.xlane.xlu0 %1639
        %1641 = vadd.xlane.f32.xlu0 %v1578
        %v1642 = vpop.xlane.xlu0 %1641
        %1643 = vadd.xlane.f32.xlu0 %v1580
        %v1644 = vpop.xlane.xlu0 %1643
        %1645 = vadd.xlane.f32.xlu0 %v1582
        %v1646 = vpop.xlane.xlu0 %1645
        %1647 = vadd.xlane.f32.xlu0 %v1584
        %v1648 = vpop.xlane.xlu0 %1647
        %1649 = vadd.xlane.f32.xlu0 %v1586
        %v1650 = vpop.xlane.xlu0 %1649
        %1651 = vadd.xlane.f32.xlu0 %v1588
        %v1652 = vpop.xlane.xlu0 %1651
        %1653 = vadd.xlane.f32.xlu0 %v1590
        %v1654 = vpop.xlane.xlu0 %1653
        %v1655 = vlog2.pop %v1592
        %v1656 = vmul.f32 %v1655, 0.6931472
        %v1657 = vlog2.pop %v1594
        %v1658 = vmul.f32 %v1657, 0.6931472
        %v1659 = vlog2.pop %v1596
        %v1660 = vmul.f32 %v1659, 0.6931472
        %v1661 = vlog2.pop %v1598
        %v1662 = vmul.f32 %v1661, 0.6931472
        %v1663 = vlog2.pop %v1600
        %v1664 = vmul.f32 %v1663, 0.6931472
        %v1665 = vlog2.pop %v1602
        %v1666 = vmul.f32 %v1665, 0.6931472
        %v1667 = vlog2.pop %v1604
        %v1668 = vmul.f32 %v1667, 0.6931472
        %v1669 = vlog2.pop %v1606
        %v1670 = vmul.f32 %v1669, 0.6931472
        %v1671 = vlog2.pop %v1608
        %v1672 = vmul.f32 %v1671, 0.6931472
        %v1673 = vlog2.pop %v1610
        %v1674 = vmul.f32 %v1673, 0.6931472
        %v1675 = vlog2.pop %v1612
        %v1676 = vmul.f32 %v1675, 0.6931472
        %v1677 = vlog2.pop %v1614
        %v1678 = vmul.f32 %v1677, 0.6931472
        %v1679 = vlog2.pop %v1616
        %v1680 = vmul.f32 %v1679, 0.6931472
        %v1681 = vlog2.pop %v1618
        %v1682 = vmul.f32 %v1681, 0.6931472
        %v1683 = vlog2.pop %v1620
        %v1684 = vmul.f32 %v1683, 0.6931472
        %v1685 = vlog2.pop %v1622
        %v1686 = vmul.f32 %v1685, 0.6931472
        %v1687 = vlog2.pop %v1624
        %v1688 = vmul.f32 %v1687, 0.6931472
        %v1689 = vlog2.pop %v1626
        %v1690 = vmul.f32 %v1689, 0.6931472
        %v1691 = vlog2.pop %v1628
        %v1692 = vmul.f32 %v1691, 0.6931472
        %v1693 = vlog2.pop %v1630
        %v1694 = vmul.f32 %v1693, 0.6931472
        %v1695 = vlog2.pop %v1632
        %v1696 = vmul.f32 %v1695, 0.6931472
        %v1697 = vlog2.pop %v1634
        %v1698 = vmul.f32 %v1697, 0.6931472
        %v1699 = vlog2.pop %v1636
        %v1700 = vmul.f32 %v1699, 0.6931472
        %v1701 = vlog2.pop %v1638
        %v1702 = vmul.f32 %v1701, 0.6931472
        %v1703 = vlog2.pop %v1640
        %v1704 = vmul.f32 %v1703, 0.6931472
        %v1705 = vlog2.pop %v1642
        %v1706 = vmul.f32 %v1705, 0.6931472
        %v1707 = vlog2.pop %v1644
        %v1708 = vmul.f32 %v1707, 0.6931472
        %v1709 = vlog2.pop %v1646
        %v1710 = vmul.f32 %v1709, 0.6931472
        %v1711 = vlog2.pop %v1648
        %v1712 = vmul.f32 %v1711, 0.6931472
        %v1713 = vlog2.pop %v1650
        %v1714 = vmul.f32 %v1713, 0.6931472
        %v1715 = vlog2.pop %v1652
        %v1716 = vmul.f32 %v1715, 0.6931472
        %v1717 = vlog2.pop %v1654
        %v1718 = vmul.f32 %v1717, 0.6931472
        %v1719 = vsub.f32 %v1495, %v1656
        %v1720 = vsub.f32 %v1496, %v1658
        %v1721 = vsub.f32 %v1497, %v1660
        %v1722 = vsub.f32 %v1498, %v1662
        %v1723 = vsub.f32 %v1499, %v1664
        %v1724 = vsub.f32 %v1500, %v1666
        %v1725 = vsub.f32 %v1501, %v1668
        %v1726 = vsub.f32 %v1502, %v1670
        %v1727 = vsub.f32 %v1503, %v1672
        %v1728 = vsub.f32 %v1504, %v1674
        %v1729 = vsub.f32 %v1505, %v1676
        %v1730 = vsub.f32 %v1506, %v1678
        %v1731 = vsub.f32 %v1507, %v1680
        %v1732 = vsub.f32 %v1508, %v1682
        %v1733 = vsub.f32 %v1509, %v1684
        %v1734 = vsub.f32 %v1510, %v1686
        %v1735 = vsub.f32 %v1511, %v1688
        %v1736 = vsub.f32 %v1512, %v1690
        %v1737 = vsub.f32 %v1513, %v1692
        %v1738 = vsub.f32 %v1514, %v1694
        %v1739 = vsub.f32 %v1515, %v1696
        %v1740 = vsub.f32 %v1516, %v1698
        %v1741 = vsub.f32 %v1517, %v1700
        %v1742 = vsub.f32 %v1518, %v1702
        %v1743 = vsub.f32 %v1519, %v1704
        %v1744 = vsub.f32 %v1520, %v1706
        %v1745 = vsub.f32 %v1521, %v1708
        %v1746 = vsub.f32 %v1522, %v1710
        %v1747 = vsub.f32 %v1523, %v1712
        %v1748 = vsub.f32 %v1524, %v1714
        %v1749 = vsub.f32 %v1525, %v1716
        %v1750 = vsub.f32 %v1526, %v1718
        %1751 = vst [vmem:[%s245] sm:$0xff] %v1719
        %1752 = vst [vmem:[%s245 + $0x8] sm:$0xff] %v1720
        %1753 = vst [vmem:[%s245 + $0x10] sm:$0xff] %v1721
        %1754 = vst [vmem:[%s245 + $0x18] sm:$0xff] %v1722
        %1755 = vst [vmem:[%s245 + $0x20] sm:$0xff] %v1723
        %1756 = vst [vmem:[%s245 + $0x28] sm:$0xff] %v1724
        %1757 = vst [vmem:[%s245 + $0x30] sm:$0xff] %v1725
        %1758 = vst [vmem:[%s245 + $0x38] sm:$0xff] %v1726
        %1759 = vst [vmem:[%s245 + $0x40] sm:$0xff] %v1727
        %1760 = vst [vmem:[%s245 + $0x48] sm:$0xff] %v1728
        %1761 = vst [vmem:[%s245 + $0x50] sm:$0xff] %v1729
        %1762 = vst [vmem:[%s245 + $0x58] sm:$0xff] %v1730
        %1763 = vst [vmem:[%s245 + $0x60] sm:$0xff] %v1731
        %1764 = vst [vmem:[%s245 + $0x68] sm:$0xff] %v1732
        %1765 = vst [vmem:[%s245 + $0x70] sm:$0xff] %v1733
        %1766 = vst [vmem:[%s245 + $0x78] sm:$0xff] %v1734
        %1767 = vst [vmem:[%s245 + $0x80] sm:$0xff] %v1735
        %1768 = vst [vmem:[%s245 + $0x88] sm:$0xff] %v1736
        %1769 = vst [vmem:[%s245 + $0x90] sm:$0xff] %v1737
        %1770 = vst [vmem:[%s245 + $0x98] sm:$0xff] %v1738
        %1771 = vst [vmem:[%s245 + $0xa0] sm:$0xff] %v1739
        %1772 = vst [vmem:[%s245 + $0xa8] sm:$0xff] %v1740
        %1773 = vst [vmem:[%s245 + $0xb0] sm:$0xff] %v1741
        %1774 = vst [vmem:[%s245 + $0xb8] sm:$0xff] %v1742
        %1775 = vst [vmem:[%s245 + $0xc0] sm:$0xff] %v1743
        %1776 = vst [vmem:[%s245 + $0xc8] sm:$0xff] %v1744
        %1777 = vst [vmem:[%s245 + $0xd0] sm:$0xff] %v1745
        %1778 = vst [vmem:[%s245 + $0xd8] sm:$0xff] %v1746
        %1779 = vst [vmem:[%s245 + $0xe0] sm:$0xff] %v1747
        %1780 = vst [vmem:[%s245 + $0xe8] sm:$0xff] %v1748
        %1781 = vst [vmem:[%s245 + $0xf0] sm:$0xff] %v1749
        %1782 = vst [vmem:[%s245 + $0xf8] sm:$0xff] %v1750
      $region48: #{gcn_net_forward.1} parent=39 // pred_fallthru
        _
      %s1783 = smul.u32 %s20, %s21
      %s1784 = smul.u32 32, %s1783
      %p1785 = scmp.lt.s32.totalorder %s1784, 31
      %s1786 = scalar_select %p1785, %s1784, 31
      %s1787 = smul.addr %s1786, 8
      %s1788 = scalar_lea.vmem %s5, %s1787
      // Predicated region
      $region49: #{gcn_net_forward.1} parent=39 // pred_check
        %p1789 = pneg %p158
      $region50: #{gcn_net_forward.1} parent=39 // pred_check_branch
        %1791 = sbr.rel (%p1789) target = $region52
      $region51: #{gcn_net_forward.1} parent=39 // pred_region
        %s1792 = smul.u32 %s20, %s21
        %s1793 = smul.u32 32, %s1792
      $region52: #{gcn_net_forward.1} parent=39 // pred_fallthru
        _
    $region40: #{gcn_net_forward.1} parent=5 // pred_fallthru
      _
    %p1794 = scmp.le.s32.totalorder 2, %s11
    // Predicated region
    $region53: #{gcn_net_forward.1} parent=5 // pred_check
      %p1795 = pneg %p1794
    $region54: #{gcn_net_forward.1} parent=5 // pred_check_branch
      %1797 = sbr.rel (%p1795) target = $region56
    $region55: #{gcn_net_forward.1} parent=5 // pred_region
      %s1798 = ssub.s32 %s11, 2
      // Predicated region
      $region57: #{gcn_net_forward.1} parent=55 // pred_check
        %p1799 = pneg %p164
      $region58: #{gcn_net_forward.1} parent=55 // pred_check_branch
        %1801 = sbr.rel (%p1799) target = $region60
      $region59: #{gcn_net_forward.1} parent=55 // pred_region
        %s1802 = smul.u32 %s22, %s23
        %s1803 = smul.u32 32, %s1802
        %p1804 = scmp.lt.s32.totalorder %s1803, 31
        %s1805 = scalar_select %p1804, %s1803, 31
        %s1806 = smul.addr %s1805, 8
        %s1807 = scalar_lea.vmem %s5, %s1806
      $region60: #{gcn_net_forward.1} parent=55 // pred_fallthru
        _
    $region56: #{gcn_net_forward.1} parent=5 // pred_fallthru
      _
  $region6: #{gcn_net_forward.1} parent=0 // loop_footer
    %s15 = sadd.s32 1, %s11
  $region7: #{gcn_net_forward.1} parent=0 // loop_footer_branch
    %10 = sbr.rel target = $region3
  $region8: #{gcn_net_forward.1} parent=0 // loop_exit
    _

</llo_original>
